<compile_context>
chip_gen: v7x
topology: tpu7x:2x2x1
jax: 0.10.0
libtpu: 0.0.40
codegen_flags: <defaults>
</compile_context>

<pallas_src>
import math
import functools

import jax
import jax.numpy as jnp
import numpy as np
from jax.experimental import pallas as pl
from jax.experimental.pallas import tpu as pltpu


def _pick_head_group(n_head, d_k, target=128):
    """Smallest divisor g of n_head with g*d_k >= target, else all heads.

    target=128 keeps the fused output projection's contraction >= one MXU width
    on every generation while minimizing the per-step f32 score intermediates
    (the binding constraint on v7x 64 MiB / v5e 16 MiB-scoped VMEM)."""
    for g in range(1, n_head + 1):
        if n_head % g == 0 and g * d_k >= target:
            return g
    return n_head


def _pick_q_tile(T, max_tq=256):
    """Query-tile size: full T for short sequences, else a 128/256 divisor."""
    if T <= max_tq:
        return T, 1
    for tq in (256, 128, 64, 32, 16, 8):
        if T % tq == 0:
            return tq, T // tq
    return T, 1


def rel_pos_attn_kernel(qu_ref, qv_ref, kt_ref, v_ref, pt_ref, wout_ref, bout_ref,
                        out_ref, *, T, P_pad, g, tq, n_q_tiles):
    hg = pl.program_id(2)

    # Rel-shift roll amount: shifted[i, j] = bd_raw[i, j + (T-1) - (q0 + i)],
    # i.e. per-row (stride=1) rotation with base shift q0 - (T-1) (mod P_pad).
    if n_q_tiles == 1:
        shift = P_pad - (T - 1)                       # static, q0 == 0
    else:
        shift = (pl.program_id(1) * tq + (P_pad - (T - 1))) % P_pad

    w = wout_ref[hg]                                  # (g*d_k, F) bf16, resident

    ctx_cols = []
    for h in range(g):
        qu_h = qu_ref[0, h]                           # (tq, d_k)   bf16 (scale + pos_bias_u folded)
        qv_h = qv_ref[0, h]                           # (tq, d_k)   bf16 (scale + pos_bias_v folded)
        kt_h = kt_ref[0, h]                           # (d_k, T)    bf16 (pre-transposed)
        v_h = v_ref[0, h]                             # (T, d_k)    bf16
        p_h = pt_ref[hg * g + h]                      # (d_k, P_pad) bf16 (pre-transposed, resident)

        # Content scores and raw positional scores (bf16 operands, f32 acc).
        ac = jnp.dot(qu_h, kt_h, preferred_element_type=jnp.float32)      # (tq, T)
        bd_raw = jnp.dot(qv_h, p_h, preferred_element_type=jnp.float32)   # (tq, P_pad)

        # TransformerXL rel_shift: one strided XLU roll, lane-0-aligned slice.
        # Kept indices j + (T-1) - i stay inside [0, 2T-2] <= P-1, so the
        # zero-padded lanes never reach the kept window.
        bd = pltpu.roll(bd_raw, shift, 1, stride=1, stride_axis=0)[:, :T]

        # TODO(synk): optional attention-mask path (mask is None here) not implemented.
        s = ac + bd                                   # scale already folded into qu/qv
        m = jnp.max(s, axis=-1, keepdims=True)
        e = jnp.exp(s - m)
        denom = jnp.sum(e, axis=-1, keepdims=True)

        ctx_h = jnp.dot(e.astype(v_h.dtype), v_h,
                        preferred_element_type=jnp.float32)               # (tq, d_k)
        # Normalize after the PV matmul (tq*d_k elems instead of tq*T).
        ctx_cols.append(ctx_h * pl.reciprocal(denom, approx=True))

    # Concatenate heads along lanes and do ONE output-projection matmul whose
    # contraction (depth g*d_k) also performs the reduction over this group's heads.
    ctx2d = jnp.concatenate(ctx_cols, axis=-1).astype(jnp.bfloat16)        # (tq, g*d_k)
    contrib = jnp.dot(ctx2d, w, preferred_element_type=jnp.float32)        # (tq, F)

    @pl.when(hg == 0)
    def _():
        out_ref[...] = (contrib + bout_ref[...])[None]                     # bias folded into step 0

    @pl.when(hg > 0)
    def _():
        out_ref[...] += contrib[None]


def rel_pos_multi_head_attention(query, key, value, pos_emb, params, n_head):
    B, T, F = query.shape
    H = n_head
    d_k = F // H
    P = pos_emb.shape[1]
    assert pos_emb.shape[0] == 1, "pos_emb is expected to have batch dim 1"
    assert P >= 2 * T - 1, "rel-shift kernel assumes pos_len >= 2*T - 1"

    scale = 1.0 / math.sqrt(d_k)

    # Full-width projections in XLA (single MXU-efficient GEMMs).
    q = query @ params["wq"].T + params["bq"]
    k = key @ params["wk"].T + params["bk"]
    v = value @ params["wv"].T + params["bv"]
    p = pos_emb[0] @ params["wpos"].T                               # (P, F)

    qh = q.reshape(B, T, H, d_k).transpose(0, 2, 1, 3)              # (B,H,T,dk)
    q_u = (qh + params["pos_bias_u"][None, :, None, :]) * scale
    q_v = (qh + params["pos_bias_v"][None, :, None, :]) * scale
    # Pre-transpose K so the kernel contraction dim (d_k) is second-to-last and
    # the lane axis is T (lane-dense).
    kt = k.reshape(B, T, H, d_k).transpose(0, 2, 3, 1)              # (B,H,dk,T)
    vh = v.reshape(B, T, H, d_k).transpose(0, 2, 1, 3)              # (B,H,T,dk)

    # Per-head positional projection, pre-transposed to (H, d_k, P_pad) and
    # lane-padded to the next multiple of 128 (pad never reaches kept columns).
    P_pad = ((P + 127) // 128) * 128
    pt = p.reshape(P, H, d_k).transpose(1, 2, 0)                    # (H, dk, P)
    pt = jnp.pad(pt, ((0, 0), (0, 0), (0, P_pad - P)))              # (H, dk, P_pad)

    g = _pick_head_group(H, d_k)
    n_groups = H // g
    tq, n_q_tiles = _pick_q_tile(T)

    # Per-group slabs of Wout^T: rows [hg*g*d_k, (hg+1)*g*d_k) of the (F,F) weight.
    wout_g = params["wout"].T.reshape(n_groups, g * d_k, F)
    bout = params["bout"].reshape(1, F).astype(jnp.float32)

    bf16 = jnp.bfloat16
    q_u, q_v, kt, vh, pt, wout_g = (x.astype(bf16)
                                    for x in (q_u, q_v, kt, vh, pt, wout_g))

    kernel = functools.partial(rel_pos_attn_kernel, T=T, P_pad=P_pad,
                               g=g, tq=tq, n_q_tiles=n_q_tiles)

    # Explicit VMEM limit (the 16/32 MiB scoped defaults are too small at
    # production T); derived from the chip when the query is available.
    try:
        vmem_cap = pltpu.get_tpu_info().vmem_capacity_bytes
    except Exception:
        vmem_cap = 64 << 20
    vmem_limit = int(min(vmem_cap * 0.7, 100 << 20))

    grid_spec = pltpu.PrefetchScalarGridSpec(
        num_scalar_prefetch=0,
        grid=(B, n_q_tiles, n_groups),
        in_specs=[
            pl.BlockSpec((1, g, tq, d_k), lambda b, qi, hg: (b, hg, qi, 0)),    # q_u
            pl.BlockSpec((1, g, tq, d_k), lambda b, qi, hg: (b, hg, qi, 0)),    # q_v
            pl.BlockSpec((1, g, d_k, T), lambda b, qi, hg: (b, hg, 0, 0)),      # K^T
            pl.BlockSpec((1, g, T, d_k), lambda b, qi, hg: (b, hg, 0, 0)),      # V
            pl.BlockSpec((H, d_k, P_pad), lambda b, qi, hg: (0, 0, 0)),         # pos^T (resident)
            pl.BlockSpec((n_groups, g * d_k, F), lambda b, qi, hg: (0, 0, 0)),  # Wout slabs (resident)
            pl.BlockSpec((1, F), lambda b, qi, hg: (0, 0)),                     # bout (resident)
        ],
        out_specs=pl.BlockSpec((1, tq, F), lambda b, qi, hg: (b, qi, 0)),
    )

    # TODO(synk): for extremely long T, add flash-style online-softmax key tiling
    # instead of materializing (tq, T) scores per head.
    return pl.pallas_call(
        kernel,
        out_shape=jax.ShapeDtypeStruct((B, T, F), jnp.float32),
        grid_spec=grid_spec,
        compiler_params=pltpu.CompilerParams(
            dimension_semantics=("parallel", "parallel", "arbitrary"),
            vmem_limit_bytes=vmem_limit),
    )(q_u, q_v, kt, vh, pt, wout_g, bout)


def reference_forward(query, key, value, pos_emb, params, n_head):
    """Pure-JAX transcription of the torch forward (mask=None)."""
    B, T, F = query.shape
    H = n_head
    d_k = F // H
    P = pos_emb.shape[1]

    q = query @ params["wq"].T + params["bq"]
    k = key @ params["wk"].T + params["bk"]
    v = value @ params["wv"].T + params["bv"]
    q = q.reshape(B, T, H, d_k)                                   # (B,T,H,dk)
    k = k.reshape(B, T, H, d_k).transpose(0, 2, 1, 3)             # (B,H,T,dk)
    v = v.reshape(B, T, H, d_k).transpose(0, 2, 1, 3)             # (B,H,T,dk)

    p = (pos_emb @ params["wpos"].T).reshape(pos_emb.shape[0], P, H, d_k)
    p = p.transpose(0, 2, 1, 3)                                   # (1,H,P,dk)

    q_u = (q + params["pos_bias_u"]).transpose(0, 2, 1, 3)        # (B,H,T,dk)
    q_v = (q + params["pos_bias_v"]).transpose(0, 2, 1, 3)        # (B,H,T,dk)

    matrix_bd = q_v @ jnp.swapaxes(p, -2, -1)                     # (B,H,T,P)
    x = jnp.pad(matrix_bd, ((0, 0), (0, 0), (0, 0), (1, 0)))
    x = x.reshape(B, H, -1, T)
    matrix_bd = x[:, :, 1:].reshape(B, H, T, P)

    matrix_ac = q_u @ jnp.swapaxes(k, -2, -1)                     # (B,H,T,T)
    matrix_bd = matrix_bd[..., :matrix_ac.shape[-1]]
    scores = (matrix_ac + matrix_bd) / math.sqrt(d_k)
    attn = jax.nn.softmax(scores, axis=-1)
    ctx = attn @ v                                                # (B,H,T,dk)
    ctx = ctx.transpose(0, 2, 1, 3).reshape(B, T, H * d_k)
    return ctx @ params["wout"].T + params["bout"]


if __name__ == "__main__":
    B, T, H, F = 2, 8, 4, 32
    d_k = F // H
    P = 2 * T - 1   # standard relative-positional-encoding length

    root = jax.random.PRNGKey(0)
    ks = jax.random.split(root, 16)
    scale = 0.1
    params = {
        "wq": jax.random.normal(ks[0], (F, F), jnp.float32) * scale,
        "bq": jax.random.normal(ks[1], (F,), jnp.float32) * scale,
        "wk": jax.random.normal(ks[2], (F, F), jnp.float32) * scale,
        "bk": jax.random.normal(ks[3], (F,), jnp.float32) * scale,
        "wv": jax.random.normal(ks[4], (F, F), jnp.float32) * scale,
        "bv": jax.random.normal(ks[5], (F,), jnp.float32) * scale,
        "wout": jax.random.normal(ks[6], (F, F), jnp.float32) * scale,
        "bout": jax.random.normal(ks[7], (F,), jnp.float32) * scale,
        "wpos": jax.random.normal(ks[8], (F, F), jnp.float32) * scale,
        "pos_bias_u": jax.random.normal(ks[9], (H, d_k), jnp.float32) * scale,
        "pos_bias_v": jax.random.normal(ks[10], (H, d_k), jnp.float32) * scale,
    }
    query = jax.random.normal(ks[11], (B, T, F), jnp.float32)
    key_in = jax.random.normal(ks[12], (B, T, F), jnp.float32)
    value = jax.random.normal(ks[13], (B, T, F), jnp.float32)
    pos_emb = jax.random.normal(ks[14], (1, P, F), jnp.float32)

    out = rel_pos_multi_head_attention(query, key_in, value, pos_emb, params, H)
    out = jax.block_until_ready(out)

    ref = reference_forward(query, key_in, value, pos_emb, params, H)
    np.testing.assert_allclose(np.asarray(out), np.asarray(ref), rtol=2e-2, atol=2e-2)
    print("KERNEL_OK")
</pallas_src>

<mosaic_0001>
module attributes {stable_mosaic.version = 11 : i64} {
  func.func @rel_pos_attn_kernel(%arg0: i32, %arg1: i32, %arg2: i32, %arg3: memref<1x4x8x8xbf16, #tpu.memory_space<vmem>>, %arg4: memref<1x4x8x8xbf16, #tpu.memory_space<vmem>>, %arg5: memref<1x4x8x8xbf16, #tpu.memory_space<vmem>>, %arg6: memref<1x4x8x8xbf16, #tpu.memory_space<vmem>>, %arg7: memref<4x8x128xbf16, #tpu.memory_space<vmem>>, %arg8: memref<1x32x32xbf16, #tpu.memory_space<vmem>>, %arg9: memref<1x32xf32, #tpu.memory_space<vmem>>, %arg10: memref<1x8x32xf32, #tpu.memory_space<vmem>>) attributes {dimension_semantics = [#tpu.dimension_semantics<parallel>, #tpu.dimension_semantics<parallel>, #tpu.dimension_semantics<arbitrary>], iteration_bounds = array<i64: 2, 1, 1>, scalar_prefetch = 0 : i64, scratch_operands = 0 : i64, tpu.core_type = #tpu.core_type<tc>, window_params = [{transform_indices = @transform_0, window_bounds = array<i64: 1, 4, 8, 8>}, {transform_indices = @transform_1, window_bounds = array<i64: 1, 4, 8, 8>}, {transform_indices = @transform_2, window_bounds = array<i64: 1, 4, 8, 8>}, {transform_indices = @transform_3, window_bounds = array<i64: 1, 4, 8, 8>}, {pipeline_mode = #tpu.pipeline_mode<synchronous>, transform_indices = @transform_4, window_bounds = array<i64: 4, 8, 128>}, {pipeline_mode = #tpu.pipeline_mode<synchronous>, transform_indices = @transform_5, window_bounds = array<i64: 1, 32, 32>}, {pipeline_mode = #tpu.pipeline_mode<synchronous>, transform_indices = @transform_6, window_bounds = array<i64: 1, 32>}, {transform_indices = @transform_7, window_bounds = array<i64: 1, 8, 32>}]} {
    %0 = arith.index_cast %arg2 : i32 to index
    %c0 = arith.constant 0 : index
    %c0_0 = arith.constant 0 : index
    %1 = vector.load %arg8[%0, %c0, %c0_0] : memref<1x32x32xbf16, #tpu.memory_space<vmem>>, vector<1x32x32xbf16>
    %2 = vector.shape_cast %1 : vector<1x32x32xbf16> to vector<32x32xbf16>
    %c0_1 = arith.constant 0 : index
    %c0_2 = arith.constant 0 : index
    %c0_3 = arith.constant 0 : index
    %c0_4 = arith.constant 0 : index
    %3 = vector.load %arg3[%c0_1, %c0_2, %c0_3, %c0_4] : memref<1x4x8x8xbf16, #tpu.memory_space<vmem>>, vector<1x1x8x8xbf16>
    %4 = vector.shape_cast %3 : vector<1x1x8x8xbf16> to vector<8x8xbf16>
    %c0_5 = arith.constant 0 : index
    %c0_6 = arith.constant 0 : index
    %c0_7 = arith.constant 0 : index
    %c0_8 = arith.constant 0 : index
    %5 = vector.load %arg4[%c0_5, %c0_6, %c0_7, %c0_8] : memref<1x4x8x8xbf16, #tpu.memory_space<vmem>>, vector<1x1x8x8xbf16>
    %6 = vector.shape_cast %5 : vector<1x1x8x8xbf16> to vector<8x8xbf16>
    %c0_9 = arith.constant 0 : index
    %c0_10 = arith.constant 0 : index
    %c0_11 = arith.constant 0 : index
    %c0_12 = arith.constant 0 : index
    %7 = vector.load %arg5[%c0_9, %c0_10, %c0_11, %c0_12] : memref<1x4x8x8xbf16, #tpu.memory_space<vmem>>, vector<1x1x8x8xbf16>
    %8 = vector.shape_cast %7 : vector<1x1x8x8xbf16> to vector<8x8xbf16>
    %c0_13 = arith.constant 0 : index
    %c0_14 = arith.constant 0 : index
    %c0_15 = arith.constant 0 : index
    %c0_16 = arith.constant 0 : index
    %9 = vector.load %arg6[%c0_13, %c0_14, %c0_15, %c0_16] : memref<1x4x8x8xbf16, #tpu.memory_space<vmem>>, vector<1x1x8x8xbf16>
    %10 = vector.shape_cast %9 : vector<1x1x8x8xbf16> to vector<8x8xbf16>
    %c4_i32 = arith.constant 4 : i32
    %11 = arith.muli %arg2, %c4_i32 : i32
    %c0_i32 = arith.constant 0 : i32
    %12 = arith.addi %11, %c0_i32 : i32
    %13 = arith.index_cast %12 : i32 to index
    %c0_17 = arith.constant 0 : index
    %c0_18 = arith.constant 0 : index
    %14 = vector.load %arg7[%13, %c0_17, %c0_18] : memref<4x8x128xbf16, #tpu.memory_space<vmem>>, vector<1x8x128xbf16>
    %15 = vector.shape_cast %14 : vector<1x8x128xbf16> to vector<8x128xbf16>
    %cst = arith.constant dense<0.000000e+00> : vector<8x8xf32>
    %16 = tpu.matmul %4, %8, %cst {dimension_numbers = #tpu.dot_dimension_numbers<[1], [0], [0], [1], [0, 0, 1, 1], [], []>} : vector<8x8xbf16>, vector<8x8xbf16>, vector<8x8xf32> -> vector<8x8xf32>
    %cst_19 = arith.constant dense<0.000000e+00> : vector<8x128xf32>
    %17 = tpu.matmul %6, %15, %cst_19 {dimension_numbers = #tpu.dot_dimension_numbers<[1], [0], [0], [1], [0, 0, 1, 1], [], []>} : vector<8x8xbf16>, vector<8x128xbf16>, vector<8x128xf32> -> vector<8x128xf32>
    %c121_i32 = arith.constant 121 : i32
    %18 = tpu.dynamic_rotate %17 by %c121_i32 dim 1 {stride = 1 : si32, stride_dimension = 0 : si32} : vector<8x128xf32>, i32 -> vector<8x128xf32>
    %19 = vector.extract_strided_slice %18 {offsets = [0, 0], sizes = [8, 8], strides = [1, 1]} : vector<8x128xf32> to vector<8x8xf32>
    %20 = arith.addf %16, %19 : vector<8x8xf32>
    %cst_20 = arith.constant dense<0xFF800000> : vector<8xf32>
    %21 = vector.multi_reduction <maximumf>, %20, %cst_20 [1] : vector<8x8xf32> to vector<8xf32>
    %22 = vector.shape_cast %21 : vector<8xf32> to vector<8x1xf32>
    %23 = vector.broadcast %22 : vector<8x1xf32> to vector<8x8xf32>
    %24 = arith.subf %20, %23 : vector<8x8xf32>
    %25 = math.exp %24 : vector<8x8xf32>
    %cst_21 = arith.constant dense<0.000000e+00> : vector<8xf32>
    %26 = vector.multi_reduction <add>, %25, %cst_21 [1] : vector<8x8xf32> to vector<8xf32>
    %27 = vector.shape_cast %26 : vector<8xf32> to vector<8x1xf32>
    %28 = arith.truncf %25 : vector<8x8xf32> to vector<8x8xbf16>
    %cst_22 = arith.constant dense<0.000000e+00> : vector<8x8xf32>
    %29 = tpu.matmul %28, %10, %cst_22 {dimension_numbers = #tpu.dot_dimension_numbers<[1], [0], [0], [1], [0, 0, 1, 1], [], []>} : vector<8x8xbf16>, vector<8x8xbf16>, vector<8x8xf32> -> vector<8x8xf32>
    %30 = tpu.reciprocal %27 {approx = true} : vector<8x1xf32> -> vector<8x1xf32>
    %31 = vector.broadcast %30 : vector<8x1xf32> to vector<8x8xf32>
    %32 = arith.mulf %29, %31 : vector<8x8xf32>
    %c0_23 = arith.constant 0 : index
    %c1 = arith.constant 1 : index
    %c0_24 = arith.constant 0 : index
    %c0_25 = arith.constant 0 : index
    %33 = vector.load %arg3[%c0_23, %c1, %c0_24, %c0_25] : memref<1x4x8x8xbf16, #tpu.memory_space<vmem>>, vector<1x1x8x8xbf16>
    %34 = vector.shape_cast %33 : vector<1x1x8x8xbf16> to vector<8x8xbf16>
    %c0_26 = arith.constant 0 : index
    %c1_27 = arith.constant 1 : index
    %c0_28 = arith.constant 0 : index
    %c0_29 = arith.constant 0 : index
    %35 = vector.load %arg4[%c0_26, %c1_27, %c0_28, %c0_29] : memref<1x4x8x8xbf16, #tpu.memory_space<vmem>>, vector<1x1x8x8xbf16>
    %36 = vector.shape_cast %35 : vector<1x1x8x8xbf16> to vector<8x8xbf16>
    %c0_30 = arith.constant 0 : index
    %c1_31 = arith.constant 1 : index
    %c0_32 = arith.constant 0 : index
    %c0_33 = arith.constant 0 : index
    %37 = vector.load %arg5[%c0_30, %c1_31, %c0_32, %c0_33] : memref<1x4x8x8xbf16, #tpu.memory_space<vmem>>, vector<1x1x8x8xbf16>
    %38 = vector.shape_cast %37 : vector<1x1x8x8xbf16> to vector<8x8xbf16>
    %c0_34 = arith.constant 0 : index
    %c1_35 = arith.constant 1 : index
    %c0_36 = arith.constant 0 : index
    %c0_37 = arith.constant 0 : index
    %39 = vector.load %arg6[%c0_34, %c1_35, %c0_36, %c0_37] : memref<1x4x8x8xbf16, #tpu.memory_space<vmem>>, vector<1x1x8x8xbf16>
    %40 = vector.shape_cast %39 : vector<1x1x8x8xbf16> to vector<8x8xbf16>
    %c4_i32_38 = arith.constant 4 : i32
    %41 = arith.muli %arg2, %c4_i32_38 : i32
    %c1_i32 = arith.constant 1 : i32
    %42 = arith.addi %41, %c1_i32 : i32
    %43 = arith.index_cast %42 : i32 to index
    %c0_39 = arith.constant 0 : index
    %c0_40 = arith.constant 0 : index
    %44 = vector.load %arg7[%43, %c0_39, %c0_40] : memref<4x8x128xbf16, #tpu.memory_space<vmem>>, vector<1x8x128xbf16>
    %45 = vector.shape_cast %44 : vector<1x8x128xbf16> to vector<8x128xbf16>
    %cst_41 = arith.constant dense<0.000000e+00> : vector<8x8xf32>
    %46 = tpu.matmul %34, %38, %cst_41 {dimension_numbers = #tpu.dot_dimension_numbers<[1], [0], [0], [1], [0, 0, 1, 1], [], []>} : vector<8x8xbf16>, vector<8x8xbf16>, vector<8x8xf32> -> vector<8x8xf32>
    %cst_42 = arith.constant dense<0.000000e+00> : vector<8x128xf32>
    %47 = tpu.matmul %36, %45, %cst_42 {dimension_numbers = #tpu.dot_dimension_numbers<[1], [0], [0], [1], [0, 0, 1, 1], [], []>} : vector<8x8xbf16>, vector<8x128xbf16>, vector<8x128xf32> -> vector<8x128xf32>
    %c121_i32_43 = arith.constant 121 : i32
    %48 = tpu.dynamic_rotate %47 by %c121_i32_43 dim 1 {stride = 1 : si32, stride_dimension = 0 : si32} : vector<8x128xf32>, i32 -> vector<8x128xf32>
    %49 = vector.extract_strided_slice %48 {offsets = [0, 0], sizes = [8, 8], strides = [1, 1]} : vector<8x128xf32> to vector<8x8xf32>
    %50 = arith.addf %46, %49 : vector<8x8xf32>
    %cst_44 = arith.constant dense<0xFF800000> : vector<8xf32>
    %51 = vector.multi_reduction <maximumf>, %50, %cst_44 [1] : vector<8x8xf32> to vector<8xf32>
    %52 = vector.shape_cast %51 : vector<8xf32> to vector<8x1xf32>
    %53 = vector.broadcast %52 : vector<8x1xf32> to vector<8x8xf32>
    %54 = arith.subf %50, %53 : vector<8x8xf32>
    %55 = math.exp %54 : vector<8x8xf32>
    %cst_45 = arith.constant dense<0.000000e+00> : vector<8xf32>
    %56 = vector.multi_reduction <add>, %55, %cst_45 [1] : vector<8x8xf32> to vector<8xf32>
    %57 = vector.shape_cast %56 : vector<8xf32> to vector<8x1xf32>
    %58 = arith.truncf %55 : vector<8x8xf32> to vector<8x8xbf16>
    %cst_46 = arith.constant dense<0.000000e+00> : vector<8x8xf32>
    %59 = tpu.matmul %58, %40, %cst_46 {dimension_numbers = #tpu.dot_dimension_numbers<[1], [0], [0], [1], [0, 0, 1, 1], [], []>} : vector<8x8xbf16>, vector<8x8xbf16>, vector<8x8xf32> -> vector<8x8xf32>
    %60 = tpu.reciprocal %57 {approx = true} : vector<8x1xf32> -> vector<8x1xf32>
    %61 = vector.broadcast %60 : vector<8x1xf32> to vector<8x8xf32>
    %62 = arith.mulf %59, %61 : vector<8x8xf32>
    %c0_47 = arith.constant 0 : index
    %c2 = arith.constant 2 : index
    %c0_48 = arith.constant 0 : index
    %c0_49 = arith.constant 0 : index
    %63 = vector.load %arg3[%c0_47, %c2, %c0_48, %c0_49] : memref<1x4x8x8xbf16, #tpu.memory_space<vmem>>, vector<1x1x8x8xbf16>
    %64 = vector.shape_cast %63 : vector<1x1x8x8xbf16> to vector<8x8xbf16>
    %c0_50 = arith.constant 0 : index
    %c2_51 = arith.constant 2 : index
    %c0_52 = arith.constant 0 : index
    %c0_53 = arith.constant 0 : index
    %65 = vector.load %arg4[%c0_50, %c2_51, %c0_52, %c0_53] : memref<1x4x8x8xbf16, #tpu.memory_space<vmem>>, vector<1x1x8x8xbf16>
    %66 = vector.shape_cast %65 : vector<1x1x8x8xbf16> to vector<8x8xbf16>
    %c0_54 = arith.constant 0 : index
    %c2_55 = arith.constant 2 : index
    %c0_56 = arith.constant 0 : index
    %c0_57 = arith.constant 0 : index
    %67 = vector.load %arg5[%c0_54, %c2_55, %c0_56, %c0_57] : memref<1x4x8x8xbf16, #tpu.memory_space<vmem>>, vector<1x1x8x8xbf16>
    %68 = vector.shape_cast %67 : vector<1x1x8x8xbf16> to vector<8x8xbf16>
    %c0_58 = arith.constant 0 : index
    %c2_59 = arith.constant 2 : index
    %c0_60 = arith.constant 0 : index
    %c0_61 = arith.constant 0 : index
    %69 = vector.load %arg6[%c0_58, %c2_59, %c0_60, %c0_61] : memref<1x4x8x8xbf16, #tpu.memory_space<vmem>>, vector<1x1x8x8xbf16>
    %70 = vector.shape_cast %69 : vector<1x1x8x8xbf16> to vector<8x8xbf16>
    %c4_i32_62 = arith.constant 4 : i32
    %71 = arith.muli %arg2, %c4_i32_62 : i32
    %c2_i32 = arith.constant 2 : i32
    %72 = arith.addi %71, %c2_i32 : i32
    %73 = arith.index_cast %72 : i32 to index
    %c0_63 = arith.constant 0 : index
    %c0_64 = arith.constant 0 : index
    %74 = vector.load %arg7[%73, %c0_63, %c0_64] : memref<4x8x128xbf16, #tpu.memory_space<vmem>>, vector<1x8x128xbf16>
    %75 = vector.shape_cast %74 : vector<1x8x128xbf16> to vector<8x128xbf16>
    %cst_65 = arith.constant dense<0.000000e+00> : vector<8x8xf32>
    %76 = tpu.matmul %64, %68, %cst_65 {dimension_numbers = #tpu.dot_dimension_numbers<[1], [0], [0], [1], [0, 0, 1, 1], [], []>} : vector<8x8xbf16>, vector<8x8xbf16>, vector<8x8xf32> -> vector<8x8xf32>
    %cst_66 = arith.constant dense<0.000000e+00> : vector<8x128xf32>
    %77 = tpu.matmul %66, %75, %cst_66 {dimension_numbers = #tpu.dot_dimension_numbers<[1], [0], [0], [1], [0, 0, 1, 1], [], []>} : vector<8x8xbf16>, vector<8x128xbf16>, vector<8x128xf32> -> vector<8x128xf32>
    %c121_i32_67 = arith.constant 121 : i32
    %78 = tpu.dynamic_rotate %77 by %c121_i32_67 dim 1 {stride = 1 : si32, stride_dimension = 0 : si32} : vector<8x128xf32>, i32 -> vector<8x128xf32>
    %79 = vector.extract_strided_slice %78 {offsets = [0, 0], sizes = [8, 8], strides = [1, 1]} : vector<8x128xf32> to vector<8x8xf32>
    %80 = arith.addf %76, %79 : vector<8x8xf32>
    %cst_68 = arith.constant dense<0xFF800000> : vector<8xf32>
    %81 = vector.multi_reduction <maximumf>, %80, %cst_68 [1] : vector<8x8xf32> to vector<8xf32>
    %82 = vector.shape_cast %81 : vector<8xf32> to vector<8x1xf32>
    %83 = vector.broadcast %82 : vector<8x1xf32> to vector<8x8xf32>
    %84 = arith.subf %80, %83 : vector<8x8xf32>
    %85 = math.exp %84 : vector<8x8xf32>
    %cst_69 = arith.constant dense<0.000000e+00> : vector<8xf32>
    %86 = vector.multi_reduction <add>, %85, %cst_69 [1] : vector<8x8xf32> to vector<8xf32>
    %87 = vector.shape_cast %86 : vector<8xf32> to vector<8x1xf32>
    %88 = arith.truncf %85 : vector<8x8xf32> to vector<8x8xbf16>
    %cst_70 = arith.constant dense<0.000000e+00> : vector<8x8xf32>
    %89 = tpu.matmul %88, %70, %cst_70 {dimension_numbers = #tpu.dot_dimension_numbers<[1], [0], [0], [1], [0, 0, 1, 1], [], []>} : vector<8x8xbf16>, vector<8x8xbf16>, vector<8x8xf32> -> vector<8x8xf32>
    %90 = tpu.reciprocal %87 {approx = true} : vector<8x1xf32> -> vector<8x1xf32>
    %91 = vector.broadcast %90 : vector<8x1xf32> to vector<8x8xf32>
    %92 = arith.mulf %89, %91 : vector<8x8xf32>
    %c0_71 = arith.constant 0 : index
    %c3 = arith.constant 3 : index
    %c0_72 = arith.constant 0 : index
    %c0_73 = arith.constant 0 : index
    %93 = vector.load %arg3[%c0_71, %c3, %c0_72, %c0_73] : memref<1x4x8x8xbf16, #tpu.memory_space<vmem>>, vector<1x1x8x8xbf16>
    %94 = vector.shape_cast %93 : vector<1x1x8x8xbf16> to vector<8x8xbf16>
    %c0_74 = arith.constant 0 : index
    %c3_75 = arith.constant 3 : index
    %c0_76 = arith.constant 0 : index
    %c0_77 = arith.constant 0 : index
    %95 = vector.load %arg4[%c0_74, %c3_75, %c0_76, %c0_77] : memref<1x4x8x8xbf16, #tpu.memory_space<vmem>>, vector<1x1x8x8xbf16>
    %96 = vector.shape_cast %95 : vector<1x1x8x8xbf16> to vector<8x8xbf16>
    %c0_78 = arith.constant 0 : index
    %c3_79 = arith.constant 3 : index
    %c0_80 = arith.constant 0 : index
    %c0_81 = arith.constant 0 : index
    %97 = vector.load %arg5[%c0_78, %c3_79, %c0_80, %c0_81] : memref<1x4x8x8xbf16, #tpu.memory_space<vmem>>, vector<1x1x8x8xbf16>
    %98 = vector.shape_cast %97 : vector<1x1x8x8xbf16> to vector<8x8xbf16>
    %c0_82 = arith.constant 0 : index
    %c3_83 = arith.constant 3 : index
    %c0_84 = arith.constant 0 : index
    %c0_85 = arith.constant 0 : index
    %99 = vector.load %arg6[%c0_82, %c3_83, %c0_84, %c0_85] : memref<1x4x8x8xbf16, #tpu.memory_space<vmem>>, vector<1x1x8x8xbf16>
    %100 = vector.shape_cast %99 : vector<1x1x8x8xbf16> to vector<8x8xbf16>
    %c4_i32_86 = arith.constant 4 : i32
    %101 = arith.muli %arg2, %c4_i32_86 : i32
    %c3_i32 = arith.constant 3 : i32
    %102 = arith.addi %101, %c3_i32 : i32
    %103 = arith.index_cast %102 : i32 to index
    %c0_87 = arith.constant 0 : index
    %c0_88 = arith.constant 0 : index
    %104 = vector.load %arg7[%103, %c0_87, %c0_88] : memref<4x8x128xbf16, #tpu.memory_space<vmem>>, vector<1x8x128xbf16>
    %105 = vector.shape_cast %104 : vector<1x8x128xbf16> to vector<8x128xbf16>
    %cst_89 = arith.constant dense<0.000000e+00> : vector<8x8xf32>
    %106 = tpu.matmul %94, %98, %cst_89 {dimension_numbers = #tpu.dot_dimension_numbers<[1], [0], [0], [1], [0, 0, 1, 1], [], []>} : vector<8x8xbf16>, vector<8x8xbf16>, vector<8x8xf32> -> vector<8x8xf32>
    %cst_90 = arith.constant dense<0.000000e+00> : vector<8x128xf32>
    %107 = tpu.matmul %96, %105, %cst_90 {dimension_numbers = #tpu.dot_dimension_numbers<[1], [0], [0], [1], [0, 0, 1, 1], [], []>} : vector<8x8xbf16>, vector<8x128xbf16>, vector<8x128xf32> -> vector<8x128xf32>
    %c121_i32_91 = arith.constant 121 : i32
    %108 = tpu.dynamic_rotate %107 by %c121_i32_91 dim 1 {stride = 1 : si32, stride_dimension = 0 : si32} : vector<8x128xf32>, i32 -> vector<8x128xf32>
    %109 = vector.extract_strided_slice %108 {offsets = [0, 0], sizes = [8, 8], strides = [1, 1]} : vector<8x128xf32> to vector<8x8xf32>
    %110 = arith.addf %106, %109 : vector<8x8xf32>
    %cst_92 = arith.constant dense<0xFF800000> : vector<8xf32>
    %111 = vector.multi_reduction <maximumf>, %110, %cst_92 [1] : vector<8x8xf32> to vector<8xf32>
    %112 = vector.shape_cast %111 : vector<8xf32> to vector<8x1xf32>
    %113 = vector.broadcast %112 : vector<8x1xf32> to vector<8x8xf32>
    %114 = arith.subf %110, %113 : vector<8x8xf32>
    %115 = math.exp %114 : vector<8x8xf32>
    %cst_93 = arith.constant dense<0.000000e+00> : vector<8xf32>
    %116 = vector.multi_reduction <add>, %115, %cst_93 [1] : vector<8x8xf32> to vector<8xf32>
    %117 = vector.shape_cast %116 : vector<8xf32> to vector<8x1xf32>
    %118 = arith.truncf %115 : vector<8x8xf32> to vector<8x8xbf16>
    %cst_94 = arith.constant dense<0.000000e+00> : vector<8x8xf32>
    %119 = tpu.matmul %118, %100, %cst_94 {dimension_numbers = #tpu.dot_dimension_numbers<[1], [0], [0], [1], [0, 0, 1, 1], [], []>} : vector<8x8xbf16>, vector<8x8xbf16>, vector<8x8xf32> -> vector<8x8xf32>
    %120 = tpu.reciprocal %117 {approx = true} : vector<8x1xf32> -> vector<8x1xf32>
    %121 = vector.broadcast %120 : vector<8x1xf32> to vector<8x8xf32>
    %122 = arith.mulf %119, %121 : vector<8x8xf32>
    %123 = tpu.concatenate %32, %62, %92, %122 in 1 : vector<8x8xf32>, vector<8x8xf32>, vector<8x8xf32>, vector<8x8xf32> -> vector<8x32xf32>
    %124 = arith.truncf %123 : vector<8x32xf32> to vector<8x32xbf16>
    %cst_95 = arith.constant dense<0.000000e+00> : vector<8x32xf32>
    %125 = tpu.matmul %124, %2, %cst_95 {dimension_numbers = #tpu.dot_dimension_numbers<[1], [0], [0], [1], [0, 0, 1, 1], [], []>} : vector<8x32xbf16>, vector<32x32xbf16>, vector<8x32xf32> -> vector<8x32xf32>
    %c0_i32_96 = arith.constant 0 : i32
    %126 = arith.cmpi eq, %arg2, %c0_i32_96 : i32
    %127 = arith.extui %126 : i1 to i32
    %c0_i32_97 = arith.constant 0 : i32
    %128 = arith.cmpi ne, %127, %c0_i32_97 : i32
    scf.if %128 {
      %c0_100 = arith.constant 0 : index
      %c0_101 = arith.constant 0 : index
      %132 = vector.load %arg9[%c0_100, %c0_101] : memref<1x32xf32, #tpu.memory_space<vmem>>, vector<1x32xf32>
      %133 = vector.broadcast %132 : vector<1x32xf32> to vector<8x32xf32>
      %134 = arith.addf %125, %133 : vector<8x32xf32>
      %135 = vector.shape_cast %134 : vector<8x32xf32> to vector<1x8x32xf32>
      %c0_102 = arith.constant 0 : index
      %c0_103 = arith.constant 0 : index
      %c0_104 = arith.constant 0 : index
      %136 = vector.load %arg10[%c0_102, %c0_103, %c0_104] : memref<1x8x32xf32, #tpu.memory_space<vmem>>, vector<1x8x32xf32>
      tpu.vector_store %arg10[%c0_102, %c0_103, %c0_104], %135 {strides = array<i32>} : memref<1x8x32xf32, #tpu.memory_space<vmem>>, vector<1x8x32xf32>,
    } else {
    }
    %c0_i32_98 = arith.constant 0 : i32
    %129 = arith.cmpi sgt, %arg2, %c0_i32_98 : i32
    %130 = arith.extui %129 : i1 to i32
    %c0_i32_99 = arith.constant 0 : i32
    %131 = arith.cmpi ne, %130, %c0_i32_99 : i32
    scf.if %131 {
      %c0_100 = arith.constant 0 : index
      %c0_101 = arith.constant 0 : index
      %c0_102 = arith.constant 0 : index
      %132 = vector.load %arg10[%c0_100, %c0_101, %c0_102] : memref<1x8x32xf32, #tpu.memory_space<vmem>>, vector<1x8x32xf32>
      %133 = vector.shape_cast %125 : vector<8x32xf32> to vector<1x8x32xf32>
      %134 = arith.addf %132, %133 : vector<1x8x32xf32>
      %c0_103 = arith.constant 0 : index
      %c0_104 = arith.constant 0 : index
      %c0_105 = arith.constant 0 : index
      %135 = vector.load %arg10[%c0_103, %c0_104, %c0_105] : memref<1x8x32xf32, #tpu.memory_space<vmem>>, vector<1x8x32xf32>
      tpu.vector_store %arg10[%c0_103, %c0_104, %c0_105], %134 {strides = array<i32>} : memref<1x8x32xf32, #tpu.memory_space<vmem>>, vector<1x8x32xf32>,
    } else {
    }
    return
  }
  func.func @transform_0(%arg0: i32, %arg1: i32, %arg2: i32) -> (i32, i32, i32, i32) {
    %c0_i32 = arith.constant 0 : i32
    %c0_i32_0 = arith.constant 0 : i32
    return %arg0, %arg2, %arg1, %c0_i32 : i32, i32, i32, i32
  }
  func.func @transform_1(%arg0: i32, %arg1: i32, %arg2: i32) -> (i32, i32, i32, i32) {
    %c0_i32 = arith.constant 0 : i32
    %c0_i32_0 = arith.constant 0 : i32
    return %arg0, %arg2, %arg1, %c0_i32 : i32, i32, i32, i32
  }
  func.func @transform_2(%arg0: i32, %arg1: i32, %arg2: i32) -> (i32, i32, i32, i32) {
    %c0_i32 = arith.constant 0 : i32
    %c0_i32_0 = arith.constant 0 : i32
    %c0_i32_1 = arith.constant 0 : i32
    return %arg0, %arg2, %c0_i32, %c0_i32_0 : i32, i32, i32, i32
  }
  func.func @transform_3(%arg0: i32, %arg1: i32, %arg2: i32) -> (i32, i32, i32, i32) {
    %c0_i32 = arith.constant 0 : i32
    %c0_i32_0 = arith.constant 0 : i32
    %c0_i32_1 = arith.constant 0 : i32
    return %arg0, %arg2, %c0_i32, %c0_i32_0 : i32, i32, i32, i32
  }
  func.func @transform_4(%arg0: i32, %arg1: i32, %arg2: i32) -> (i32, i32, i32) {
    %c0_i32 = arith.constant 0 : i32
    %c0_i32_0 = arith.constant 0 : i32
    %c0_i32_1 = arith.constant 0 : i32
    %c0_i32_2 = arith.constant 0 : i32
    return %c0_i32, %c0_i32_0, %c0_i32_1 : i32, i32, i32
  }
  func.func @transform_5(%arg0: i32, %arg1: i32, %arg2: i32) -> (i32, i32, i32) {
    %c0_i32 = arith.constant 0 : i32
    %c0_i32_0 = arith.constant 0 : i32
    %c0_i32_1 = arith.constant 0 : i32
    %c0_i32_2 = arith.constant 0 : i32
    return %c0_i32, %c0_i32_0, %c0_i32_1 : i32, i32, i32
  }
  func.func @transform_6(%arg0: i32, %arg1: i32, %arg2: i32) -> (i32, i32) {
    %c0_i32 = arith.constant 0 : i32
    %c0_i32_0 = arith.constant 0 : i32
    %c0_i32_1 = arith.constant 0 : i32
    return %c0_i32, %c0_i32_0 : i32, i32
  }
  func.func @transform_7(%arg0: i32, %arg1: i32, %arg2: i32) -> (i32, i32, i32) {
    %c0_i32 = arith.constant 0 : i32
    %c0_i32_0 = arith.constant 0 : i32
    return %arg0, %arg1, %c0_i32 : i32, i32, i32
  }
}

</mosaic_0001>

<llo_original>
// kernel: tpu_custom_call.1
$region0: #{tpu_custom_call.1}
  #allocation0 [shape = 'u32[]', space=smem, size = 0x4, offset = 0x4, fixed_abs, tag = 'smem constant byte address 0x4 - core index']
  #allocation1 [shape = 'u32[144,128]{1,0:T(1,128)}', space=vmem, size = 0x12000, scoped, tag = 'internal scratch']
  %s0 = inlined_call_operand.hbm [shape: bf16[2,4,8,8], index: 0, kind: input, shape index: {}]
  %s1 = inlined_call_operand.hbm [shape: bf16[2,4,8,8], index: 1, kind: input, shape index: {}]
  %s2 = inlined_call_operand.hbm [shape: bf16[2,4,8,8], index: 2, kind: input, shape index: {}]
  %s3 = inlined_call_operand.hbm [shape: bf16[2,4,8,8], index: 3, kind: input, shape index: {}]
  %s4 = inlined_call_operand.hbm [shape: bf16[4,8,128], index: 4, kind: input, shape index: {}]
  %s5 = inlined_call_operand.vmem [shape: bf16[1,32,32], index: 5, kind: input, shape index: {}]
  %s6 = inlined_call_operand.vmem [shape: f32[1,32], index: 6, kind: input, shape index: {}]
  %s7 = inlined_call_operand.hbm [shape: f32[2,8,32], index: 7, kind: output, shape index: {}]
  %s8 = sld [smem:[#allocation0]]
  $region89: #{tpu_custom_call.1} parent=0
    _
  %s10 = ssub.s32 1, %s8
  %s11 = scalar_select 0, %s10, %s8
  $region1: #{tpu_custom_call.1} parent=0
    #allocation2 [shape = 'u8[16384]{0}', space=vmem, size = 0x4000, scoped, tag = 'input window, operand 0']
    #allocation3 [shape = 's32[2]{0}', space=sflag, size = 0x8, scoped, tag = 'scoped memory for tpu_custom_call.1']
    #allocation4 [shape = 's32[2]{0}', space=sflag, size = 0x8, scoped, tag = 'scoped memory for tpu_custom_call.1']
    #allocation5 [shape = 'u8[16384]{0}', space=vmem, size = 0x4000, scoped, tag = 'input window, operand 1']
    #allocation6 [shape = 's32[2]{0}', space=sflag, size = 0x8, scoped, tag = 'scoped memory for tpu_custom_call.1']
    #allocation7 [shape = 'u8[16384]{0}', space=vmem, size = 0x4000, scoped, tag = 'input window, operand 2']
    #allocation8 [shape = 'u8[16384]{0}', space=vmem, size = 0x4000, scoped, tag = 'input window, operand 3']
    #allocation9 [shape = 's32[2]{0}', space=sflag, size = 0x8, scoped, tag = 'scoped memory for tpu_custom_call.1']
    #allocation10 [shape = 'u8[8192]{0}', space=vmem, size = 0x2000, scoped, tag = 'input window, operand 4, single buffered']
    #allocation11 [shape = 'u8[8192]{0}', space=vmem, size = 0x2000, scoped, tag = 'output window, operand 0']
    %12 = vsyncpa [#allocation3], 0
    %s13 = scalar_lea.sflag [#allocation3], 1
    %14 = vsyncpa %s13, 0
    %15 = vsyncpa [#allocation6], 0
    %s16 = scalar_lea.sflag [#allocation6], 1
    %17 = vsyncpa %s16, 0
    %18 = vsyncpa [#allocation9], 0
    %s19 = scalar_lea.sflag [#allocation9], 1
    %20 = vsyncpa %s19, 0
    %21 = vsyncpa [#allocation4], 0
    %s22 = scalar_lea.sflag [#allocation4], 1
    %23 = vsyncpa %s22, 0
    loop: start=0, step=1, limit=4
    $region2: #{tpu_custom_call.1} parent=1 // loop_pre_header
      _
    $region3: #{tpu_custom_call.1} parent=1 // loop_header
      %s25 = sphi 0, %s29
      %p26 = scmp.ge.s32.totalorder %s25, 4
      %s32 = sphi 0, %s51
      %s33 = sphi 0, %s47
      %s34 = sphi 0, %s43
      %s35 = sphi 0, %s32
      %s36 = sphi 0, %s33
      %s37 = sphi 0, %s34
      %s38 = sphi 0, %s35
      %s39 = sphi 0, %s36
      %s40 = sphi 0, %s37
      %s58 = sphi 0, %s60
      %s61 = sphi 0, %s58
      %s62 = sphi 0, %s61
      %s78 = sphi 0, %s62
      %s88 = sphi 0, %s90
      %s91 = sphi 0, %s88
      %s92 = sphi 0, %s91
      %s108 = sphi 0, %s92
      %s116 = sphi 0, %s118
      %s119 = sphi 0, %s116
      %s120 = sphi 0, %s119
      %s136 = sphi 0, %s120
      %s144 = sphi 0, %s146
      %s147 = sphi 0, %s144
      %s148 = sphi 0, %s147
      %s164 = sphi 0, %s148
      %s168 = sphi 0, %s168
      %s170 = sphi 0, %s168
      %s171 = sphi 0, %s170
      %s185 = sphi 0, %s171
      %s189 = sphi 0, %s189
      %s191 = sphi 0, %s189
      %s192 = sphi 0, %s191
      %s206 = sphi 0, %s192
      %s210 = sphi 0, %s210
      %s212 = sphi 0, %s210
      %s213 = sphi 0, %s212
      %s227 = sphi 0, %s213
      %s235 = sphi 0, %s237
      %s238 = sphi 0, %s235
      %s239 = sphi 0, %s238
      %s255 = sphi 0, %s239
    $region4: #{tpu_custom_call.1} parent=1 // loop_header_branch
      %28 = sbr.rel (%p26) target = $region8
    $region5: #{tpu_custom_call.1} parent=1 // loop_body
      %s30 = ssub.s32 %s25, 1
      %s31 = ssub.s32 %s25, 2
      %s41 = sadd.s32 1, %s34
      %p42 = scmp.ge.s32.totalorder %s41, 1
      %s43 = scalar_select %p42, 0, %s41
      %s44 = sadd.s32 1, %s33
      %s45 = scalar_select %p42, %s44, %s33
      %p46 = scmp.ge.s32.totalorder %s45, 1
      %s47 = scalar_select %p46, 0, %s45
      %s48 = sadd.s32 1, %s32
      %s49 = scalar_select %p46, %s48, %s32
      %p50 = scmp.ge.s32.totalorder %s49, 2
      %s51 = scalar_select %p50, 0, %s49
      %s52 = ssub.s32 %s32, %s51
      %s53 = ssub.s32 %s34, %s43
      %s54 = sor.u32 %s52, %s53
      %s55 = ssub.s32 %s33, %s47
      %s56 = sor.u32 %s54, %s55
      %p57 = scmp.eq.s32.totalorder %s56, 0
      %s59 = sadd.s32 %s58, 1
      %s60 = scalar_select %p57, %s58, %s59
      %p63 = pneg %p57
      %p64 = scmp.eq.s32.totalorder %s25, 1
      %p65 = por %p63, %p64
      %p66 = scmp.ne.s32.totalorder %s58, %s61
      %p67 = scmp.eq.s32.totalorder %s25, 0
      %p68 = por %p66, %p67
      %p69 = scmp.ne.s32.totalorder %s58, %s61
      %p70 = scmp.eq.s32.totalorder %s30, 1
      %p71 = por %p69, %p70
      %p72 = scmp.ne.s32.totalorder %s61, %s62
      %p73 = scmp.eq.s32.totalorder %s30, 0
      %p74 = por %p72, %p73
      %p75 = scmp.ne.s32.totalorder %s61, %s62
      %p76 = scmp.eq.s32.totalorder %s31, 1
      %p77 = por %p75, %p76
      %p79 = scmp.ne.s32.totalorder %s62, %s78
      %p80 = scmp.eq.s32.totalorder %s31, 0
      %p81 = por %p79, %p80
      %s82 = ssub.s32 %s32, %s51
      %s83 = ssub.s32 %s34, %s43
      %s84 = sor.u32 %s82, %s83
      %s85 = ssub.s32 %s33, %s47
      %s86 = sor.u32 %s84, %s85
      %p87 = scmp.eq.s32.totalorder %s86, 0
      %s89 = sadd.s32 %s88, 1
      %s90 = scalar_select %p87, %s88, %s89
      %p93 = pneg %p87
      %p94 = scmp.eq.s32.totalorder %s25, 1
      %p95 = por %p93, %p94
      %p96 = scmp.ne.s32.totalorder %s88, %s91
      %p97 = scmp.eq.s32.totalorder %s25, 0
      %p98 = por %p96, %p97
      %p99 = scmp.ne.s32.totalorder %s88, %s91
      %p100 = scmp.eq.s32.totalorder %s30, 1
      %p101 = por %p99, %p100
      %p102 = scmp.ne.s32.totalorder %s91, %s92
      %p103 = scmp.eq.s32.totalorder %s30, 0
      %p104 = por %p102, %p103
      %p105 = scmp.ne.s32.totalorder %s91, %s92
      %p106 = scmp.eq.s32.totalorder %s31, 1
      %p107 = por %p105, %p106
      %p109 = scmp.ne.s32.totalorder %s92, %s108
      %p110 = scmp.eq.s32.totalorder %s31, 0
      %p111 = por %p109, %p110
      %s112 = ssub.s32 %s32, %s51
      %s113 = ssub.s32 %s34, %s43
      %s114 = sor.u32 %s112, %s113
      %p115 = scmp.eq.s32.totalorder %s114, 0
      %s117 = sadd.s32 %s116, 1
      %s118 = scalar_select %p115, %s116, %s117
      %p121 = pneg %p115
      %p122 = scmp.eq.s32.totalorder %s25, 1
      %p123 = por %p121, %p122
      %p124 = scmp.ne.s32.totalorder %s116, %s119
      %p125 = scmp.eq.s32.totalorder %s25, 0
      %p126 = por %p124, %p125
      %p127 = scmp.ne.s32.totalorder %s116, %s119
      %p128 = scmp.eq.s32.totalorder %s30, 1
      %p129 = por %p127, %p128
      %p130 = scmp.ne.s32.totalorder %s119, %s120
      %p131 = scmp.eq.s32.totalorder %s30, 0
      %p132 = por %p130, %p131
      %p133 = scmp.ne.s32.totalorder %s119, %s120
      %p134 = scmp.eq.s32.totalorder %s31, 1
      %p135 = por %p133, %p134
      %p137 = scmp.ne.s32.totalorder %s120, %s136
      %p138 = scmp.eq.s32.totalorder %s31, 0
      %p139 = por %p137, %p138
      %s140 = ssub.s32 %s32, %s51
      %s141 = ssub.s32 %s34, %s43
      %s142 = sor.u32 %s140, %s141
      %p143 = scmp.eq.s32.totalorder %s142, 0
      %s145 = sadd.s32 %s144, 1
      %s146 = scalar_select %p143, %s144, %s145
      %p149 = pneg %p143
      %p150 = scmp.eq.s32.totalorder %s25, 1
      %p151 = por %p149, %p150
      %p152 = scmp.ne.s32.totalorder %s144, %s147
      %p153 = scmp.eq.s32.totalorder %s25, 0
      %p154 = por %p152, %p153
      %p155 = scmp.ne.s32.totalorder %s144, %s147
      %p156 = scmp.eq.s32.totalorder %s30, 1
      %p157 = por %p155, %p156
      %p158 = scmp.ne.s32.totalorder %s147, %s148
      %p159 = scmp.eq.s32.totalorder %s30, 0
      %p160 = por %p158, %p159
      %p161 = scmp.ne.s32.totalorder %s147, %s148
      %p162 = scmp.eq.s32.totalorder %s31, 1
      %p163 = por %p161, %p162
      %p165 = scmp.ne.s32.totalorder %s148, %s164
      %p166 = scmp.eq.s32.totalorder %s31, 0
      %p167 = por %p165, %p166
      %s169 = sadd.s32 %s168, 1
      %p172 = scmp.eq.s32.totalorder %s25, 1
      %p173 = scmp.ne.s32.totalorder %s168, %s170
      %p174 = scmp.eq.s32.totalorder %s25, 0
      %p175 = por %p173, %p174
      %p176 = scmp.ne.s32.totalorder %s168, %s170
      %p177 = scmp.eq.s32.totalorder %s30, 1
      %p178 = por %p176, %p177
      %p179 = scmp.ne.s32.totalorder %s170, %s171
      %p180 = scmp.eq.s32.totalorder %s30, 0
      %p181 = por %p179, %p180
      %p182 = scmp.ne.s32.totalorder %s170, %s171
      %p183 = scmp.eq.s32.totalorder %s31, 1
      %p184 = por %p182, %p183
      %p186 = scmp.ne.s32.totalorder %s171, %s185
      %p187 = scmp.eq.s32.totalorder %s31, 0
      %p188 = por %p186, %p187
      %s190 = sadd.s32 %s189, 1
      %p193 = scmp.eq.s32.totalorder %s25, 1
      %p194 = scmp.ne.s32.totalorder %s189, %s191
      %p195 = scmp.eq.s32.totalorder %s25, 0
      %p196 = por %p194, %p195
      %p197 = scmp.ne.s32.totalorder %s189, %s191
      %p198 = scmp.eq.s32.totalorder %s30, 1
      %p199 = por %p197, %p198
      %p200 = scmp.ne.s32.totalorder %s191, %s192
      %p201 = scmp.eq.s32.totalorder %s30, 0
      %p202 = por %p200, %p201
      %p203 = scmp.ne.s32.totalorder %s191, %s192
      %p204 = scmp.eq.s32.totalorder %s31, 1
      %p205 = por %p203, %p204
      %p207 = scmp.ne.s32.totalorder %s192, %s206
      %p208 = scmp.eq.s32.totalorder %s31, 0
      %p209 = por %p207, %p208
      %s211 = sadd.s32 %s210, 1
      %p214 = scmp.eq.s32.totalorder %s25, 1
      %p215 = scmp.ne.s32.totalorder %s210, %s212
      %p216 = scmp.eq.s32.totalorder %s25, 0
      %p217 = por %p215, %p216
      %p218 = scmp.ne.s32.totalorder %s210, %s212
      %p219 = scmp.eq.s32.totalorder %s30, 1
      %p220 = por %p218, %p219
      %p221 = scmp.ne.s32.totalorder %s212, %s213
      %p222 = scmp.eq.s32.totalorder %s30, 0
      %p223 = por %p221, %p222
      %p224 = scmp.ne.s32.totalorder %s212, %s213
      %p225 = scmp.eq.s32.totalorder %s31, 1
      %p226 = por %p224, %p225
      %p228 = scmp.ne.s32.totalorder %s213, %s227
      %p229 = scmp.eq.s32.totalorder %s31, 0
      %p230 = por %p228, %p229
      %s231 = ssub.s32 %s32, %s51
      %s232 = ssub.s32 %s33, %s47
      %s233 = sor.u32 %s231, %s232
      %p234 = scmp.eq.s32.totalorder %s233, 0
      %s236 = sadd.s32 %s235, 1
      %s237 = scalar_select %p234, %s235, %s236
      %p240 = pneg %p234
      %p241 = scmp.eq.s32.totalorder %s25, 1
      %p242 = por %p240, %p241
      %p243 = scmp.ne.s32.totalorder %s235, %s238
      %p244 = scmp.eq.s32.totalorder %s25, 0
      %p245 = por %p243, %p244
      %p246 = scmp.ne.s32.totalorder %s235, %s238
      %p247 = scmp.eq.s32.totalorder %s30, 1
      %p248 = por %p246, %p247
      %p249 = scmp.ne.s32.totalorder %s238, %s239
      %p250 = scmp.eq.s32.totalorder %s30, 0
      %p251 = por %p249, %p250
      %p252 = scmp.ne.s32.totalorder %s238, %s239
      %p253 = scmp.eq.s32.totalorder %s31, 1
      %p254 = por %p252, %p253
      %p256 = scmp.ne.s32.totalorder %s239, %s255
      %p257 = scmp.eq.s32.totalorder %s31, 0
      %p258 = por %p256, %p257
      %p259 = scmp.le.s32.totalorder 1, %s25
      %p260 = scmp.lt.s32.totalorder %s25, 3
      %p261 = pnand %p259, %p260
      %p262 = pneg %p261
      // Predicated region
      $region9: #{tpu_custom_call.1} parent=5 // pred_check
        _
      $region10: #{tpu_custom_call.1} parent=5 // pred_check_branch
        %264 = sbr.rel (%p261) target = $region12
      $region11: #{tpu_custom_call.1} parent=5 // pred_region
        %s265 = ssub.s32 %s25, 1
        // Predicated region
        $region13: #{tpu_custom_call.1} parent=11 // pred_check
          %p266 = pneg %p181
        $region14: #{tpu_custom_call.1} parent=11 // pred_check_branch
          %268 = sbr.rel (%p266) target = $region16
        $region15: #{tpu_custom_call.1} parent=11 // pred_region
          %s270 = ssub.s32 256, 256
          %271 = vsyncadd [#allocation9], %s270
          %s272 = sshll.u32 [#allocation10], 4
          %s273 = int_to_ptr.vmem [resolvable:$true] %s272
          %278 = dma.hbm_to_vmem [thread:$0]  %s4, 256, %s273, [#allocation9], 64, 64, 4
        $region16: #{tpu_custom_call.1} parent=11 // pred_fallthru
          _
        // Predicated region
        $region17: #{tpu_custom_call.1} parent=11 // pred_check
          %p279 = pneg %p202
        $region18: #{tpu_custom_call.1} parent=11 // pred_check_branch
          %281 = sbr.rel (%p279) target = $region20
        $region19: #{tpu_custom_call.1} parent=11 // pred_region
          _
        $region20: #{tpu_custom_call.1} parent=11 // pred_fallthru
          _
        // Predicated region
        $region21: #{tpu_custom_call.1} parent=11 // pred_check
          %p282 = pneg %p223
        $region22: #{tpu_custom_call.1} parent=11 // pred_check_branch
          %284 = sbr.rel (%p282) target = $region24
        $region23: #{tpu_custom_call.1} parent=11 // pred_region
          _
        $region24: #{tpu_custom_call.1} parent=11 // pred_fallthru
          _
      $region12: #{tpu_custom_call.1} parent=5 // pred_fallthru
        _
      %p285 = scmp.lt.s32.totalorder %s25, 2
      // Predicated region
      $region25: #{tpu_custom_call.1} parent=5 // pred_check
        %p286 = pneg %p285
      $region26: #{tpu_custom_call.1} parent=5 // pred_check_branch
        %288 = sbr.rel (%p286) target = $region28
      $region27: #{tpu_custom_call.1} parent=5 // pred_region
        // Predicated region
        $region29: #{tpu_custom_call.1} parent=27 // pred_check
          %p289 = pneg %p68
        $region30: #{tpu_custom_call.1} parent=27 // pred_check_branch
          %291 = sbr.rel (%p289) target = $region32
        $region31: #{tpu_custom_call.1} parent=27 // pred_region
          %s292 = sand.u32 %s58, 1
          %s293 = scalar_lea.sflag [#allocation3], %s292
          %s294 = sand.u32 %s58, 1
          %s295 = smul.addr %s294, 16
          %s296 = scalar_lea.vmem [#allocation2], %s295
          %s297 = smul.u32 4, %s34
          %s299 = ssub.s32 256, 256
          %300 = vsyncadd %s293, %s299
          %s301 = sadd.s32 %s33, %s297
          %s302 = smul.addr %s32, 4
          %s303 = sadd.s32 %s301, %s302
          %s304 = smul.addr %s303, 64
          %s305 = scalar_lea.hbm %s0, %s304
          %s306 = sshll.u32 %s296, 4
          %s307 = int_to_ptr.vmem [resolvable:$true] %s306
          %312 = dma.hbm_to_vmem [thread:$0]  %s305, 256, %s307, %s293, 64, 64, 4
        $region32: #{tpu_custom_call.1} parent=27 // pred_fallthru
          _
        // Predicated region
        $region33: #{tpu_custom_call.1} parent=27 // pred_check
          %p313 = pneg %p98
        $region34: #{tpu_custom_call.1} parent=27 // pred_check_branch
          %315 = sbr.rel (%p313) target = $region36
        $region35: #{tpu_custom_call.1} parent=27 // pred_region
          %s316 = sand.u32 %s25, 1
          %s317 = scalar_lea.sflag [#allocation6], %s316
          %s318 = sand.u32 %s88, 1
          %s319 = smul.addr %s318, 16
          %s320 = scalar_lea.vmem [#allocation5], %s319
          %s321 = smul.u32 4, %s34
          %s323 = ssub.s32 256, 256
          %324 = vsyncadd %s317, %s323
          %s325 = sadd.s32 %s33, %s321
          %s326 = smul.addr %s32, 4
          %s327 = sadd.s32 %s325, %s326
          %s328 = smul.addr %s327, 64
          %s329 = scalar_lea.hbm %s1, %s328
          %s330 = sshll.u32 %s320, 4
          %s331 = int_to_ptr.vmem [resolvable:$true] %s330
          %336 = dma.hbm_to_vmem [thread:$0]  %s329, 256, %s331, %s317, 64, 64, 4
        $region36: #{tpu_custom_call.1} parent=27 // pred_fallthru
          _
        // Predicated region
        $region37: #{tpu_custom_call.1} parent=27 // pred_check
          %p337 = pneg %p126
        $region38: #{tpu_custom_call.1} parent=27 // pred_check_branch
          %339 = sbr.rel (%p337) target = $region40
        $region39: #{tpu_custom_call.1} parent=27 // pred_region
          %s340 = sand.u32 %s25, 1
          %s341 = scalar_lea.sflag [#allocation6], %s340
          %s342 = sand.u32 %s116, 1
          %s343 = smul.addr %s342, 16
          %s344 = scalar_lea.vmem [#allocation7], %s343
          %s345 = smul.u32 4, %s34
          %s347 = ssub.s32 256, 256
          %348 = vsyncadd %s341, %s347
          %s349 = smul.addr %s32, 4
          %s350 = sadd.s32 %s345, %s349
          %s351 = smul.addr %s350, 64
          %s352 = scalar_lea.hbm %s2, %s351
          %s353 = sshll.u32 %s344, 4
          %s354 = int_to_ptr.vmem [resolvable:$true] %s353
          %359 = dma.hbm_to_vmem [thread:$0]  %s352, 256, %s354, %s341, 64, 64, 4
        $region40: #{tpu_custom_call.1} parent=27 // pred_fallthru
          _
        // Predicated region
        $region41: #{tpu_custom_call.1} parent=27 // pred_check
          %p360 = pneg %p154
        $region42: #{tpu_custom_call.1} parent=27 // pred_check_branch
          %362 = sbr.rel (%p360) target = $region44
        $region43: #{tpu_custom_call.1} parent=27 // pred_region
          %s363 = sand.u32 %s25, 1
          %s364 = scalar_lea.sflag [#allocation9], %s363
          %s365 = sand.u32 %s144, 1
          %s366 = smul.addr %s365, 16
          %s367 = scalar_lea.vmem [#allocation8], %s366
          %s368 = smul.u32 4, %s34
          %s370 = ssub.s32 256, 256
          %371 = vsyncadd %s364, %s370
          %s372 = smul.addr %s32, 4
          %s373 = sadd.s32 %s368, %s372
          %s374 = smul.addr %s373, 64
          %s375 = scalar_lea.hbm %s3, %s374
          %s376 = sshll.u32 %s367, 4
          %s377 = int_to_ptr.vmem [resolvable:$true] %s376
          %382 = dma.hbm_to_vmem [thread:$0]  %s375, 256, %s377, %s364, 64, 64, 4
        $region44: #{tpu_custom_call.1} parent=27 // pred_fallthru
          _
      $region28: #{tpu_custom_call.1} parent=5 // pred_fallthru
        _
      %p383 = scmp.le.s32.totalorder 1, %s25
      %p384 = scmp.lt.s32.totalorder %s25, 3
      %p385 = pnand %p383, %p384
      %p386 = pneg %p385
      // Predicated region
      $region45: #{tpu_custom_call.1} parent=5 // pred_check
        _
      $region46: #{tpu_custom_call.1} parent=5 // pred_check_branch
        %388 = sbr.rel (%p385) target = $region48
      $region47: #{tpu_custom_call.1} parent=5 // pred_region
        %s389 = ssub.s32 %s25, 1
        %s390 = sand.u32 %s61, 1
        %s391 = scalar_lea.sflag [#allocation3], %s390
        %s392 = sand.u32 %s61, 1
        %s393 = smul.addr %s392, 16
        %s394 = scalar_lea.vmem [#allocation2], %s393
        // Predicated region
        $region49: #{tpu_custom_call.1} parent=47 // pred_check
          %p395 = pneg %p74
        $region50: #{tpu_custom_call.1} parent=47 // pred_check_branch
          %397 = sbr.rel (%p395) target = $region52
        $region51: #{tpu_custom_call.1} parent=47 // pred_region
          %398 = dma.done %s391, 256
        $region52: #{tpu_custom_call.1} parent=47 // pred_fallthru
          _
        %s399 = sand.u32 %s30, 1
        %s400 = scalar_lea.sflag [#allocation6], %s399
        %s401 = sand.u32 %s91, 1
        %s402 = smul.addr %s401, 16
        %s403 = scalar_lea.vmem [#allocation5], %s402
        // Predicated region
        $region53: #{tpu_custom_call.1} parent=47 // pred_check
          %p404 = pneg %p104
        $region54: #{tpu_custom_call.1} parent=47 // pred_check_branch
          %406 = sbr.rel (%p404) target = $region56
        $region55: #{tpu_custom_call.1} parent=47 // pred_region
          %407 = dma.done %s400, 256
        $region56: #{tpu_custom_call.1} parent=47 // pred_fallthru
          _
        %s408 = sand.u32 %s30, 1
        %s409 = scalar_lea.sflag [#allocation6], %s408
        %s410 = sand.u32 %s119, 1
        %s411 = smul.addr %s410, 16
        %s412 = scalar_lea.vmem [#allocation7], %s411
        // Predicated region
        $region57: #{tpu_custom_call.1} parent=47 // pred_check
          %p413 = pneg %p132
        $region58: #{tpu_custom_call.1} parent=47 // pred_check_branch
          %415 = sbr.rel (%p413) target = $region60
        $region59: #{tpu_custom_call.1} parent=47 // pred_region
          %416 = dma.done %s409, 256
        $region60: #{tpu_custom_call.1} parent=47 // pred_fallthru
          _
        %s417 = sand.u32 %s30, 1
        %s418 = scalar_lea.sflag [#allocation9], %s417
        %s419 = sand.u32 %s147, 1
        %s420 = smul.addr %s419, 16
        %s421 = scalar_lea.vmem [#allocation8], %s420
        // Predicated region
        $region61: #{tpu_custom_call.1} parent=47 // pred_check
          %p422 = pneg %p160
        $region62: #{tpu_custom_call.1} parent=47 // pred_check_branch
          %424 = sbr.rel (%p422) target = $region64
        $region63: #{tpu_custom_call.1} parent=47 // pred_region
          %425 = dma.done %s418, 256
        $region64: #{tpu_custom_call.1} parent=47 // pred_fallthru
          _
        // Predicated region
        $region65: #{tpu_custom_call.1} parent=47 // pred_check
          %p426 = pneg %p181
        $region66: #{tpu_custom_call.1} parent=47 // pred_check_branch
          %428 = sbr.rel (%p426) target = $region68
        $region67: #{tpu_custom_call.1} parent=47 // pred_region
          %429 = dma.done [#allocation9], 256
        $region68: #{tpu_custom_call.1} parent=47 // pred_fallthru
          _
        %s430 = sand.u32 %s61, 1
        %s431 = scalar_lea.sflag [#allocation3], %s430
        %s432 = sand.u32 %s61, 1
        %s433 = smul.addr %s432, 16
        %s434 = scalar_lea.vmem [#allocation2], %s433
        %p435 = pneg %p74
        %p436 = pneg %p71
        %s437 = sand.u32 %s30, 1
        %s438 = scalar_lea.sflag [#allocation6], %s437
        %s439 = sand.u32 %s91, 1
        %s440 = smul.addr %s439, 16
        %s441 = scalar_lea.vmem [#allocation5], %s440
        %p442 = pneg %p104
        %p443 = pneg %p101
        %s444 = sand.u32 %s30, 1
        %s445 = scalar_lea.sflag [#allocation6], %s444
        %s446 = sand.u32 %s119, 1
        %s447 = smul.addr %s446, 16
        %s448 = scalar_lea.vmem [#allocation7], %s447
        %p449 = pneg %p132
        %p450 = pneg %p129
        %s451 = sand.u32 %s30, 1
        %s452 = scalar_lea.sflag [#allocation9], %s451
        %s453 = sand.u32 %s147, 1
        %s454 = smul.addr %s453, 16
        %s455 = scalar_lea.vmem [#allocation8], %s454
        %p456 = pneg %p160
        %p457 = pneg %p157
        %p458 = pneg %p181
        %p459 = pneg %p178
        %p460 = pneg %p202
        %p461 = pneg %p199
        %p462 = pneg %p223
        %p463 = pneg %p220
        %p464 = pneg %p251
        %p465 = pneg %p248
        %s466 = sand.u32 %s238, 1
        %s467 = scalar_lea.sflag [#allocation4], %s466
        %s468 = sand.u32 %s238, 1
        %s469 = smul.addr %s468, 8
        %s470 = scalar_lea.vmem [#allocation11], %s469
        %s471 = smul.u32 4, %s37
        %s472 = smul.u32 4, %s37
        %s473 = smul.u32 4, %s37
        %s474 = smul.u32 4, %s37
        %s476 = smul.u32 %s37, 4
        %s477 = smul.addr %s476, 4
        %s478 = scalar_lea.vmem %s5, %s477
        %v479 = vld [vmem:[%s478] sm:$0xf]
        %v480 = vld [vmem:[%s478 + $0x4] sm:$0xf]
        %v481 = vld [vmem:[%s478 + $0x8] sm:$0xf]
        %v482 = vld [vmem:[%s478 + $0xc] sm:$0xf]
        %v483 = vld [vmem:[%s394] sm:$0xf]
        %v484 = vld [vmem:[%s403] sm:$0xf]
        %v485 = vld [vmem:[%s412] sm:$0xf]
        %v486 = vld [vmem:[%s421] sm:$0xf]
        %s487 = smul.addr %s476, 4
        %s488 = scalar_lea.vmem [#allocation10], %s487
        %v489 = vld [vmem:[%s488] sm:$0xf]
        %vm490 = vcmask 64512
        %v492 = vsel %vm490, %v484, 0
        %vm494 = vcmask 1043456
        %v496 = vsel %vm494, %v489, 0
        %498 = vmatprep.subr.bf16.mxu0 0
        %499 = vmatpush1.bf16.msra.mxu0 %v496
        %500 = vmatprep.subr.bf16.mxu0 0
        %501 = vmatpush1.bf16.msra.mxu0 0
        %502 = vmatprep.subr.bf16.mxu0 0
        %503 = vmatpush1.bf16.msra.mxu0 0
        %504 = vmatprep.subr.bf16.mxu0 0
        %505 = vmatpush1.bf16.msra.mxu0 0
        %506 = vmatprep.subr.bf16.mxu0 0
        %507 = vmatpush1.bf16.msra.mxu0 0
        %508 = vmatprep.subr.bf16.mxu0 0
        %509 = vmatpush1.bf16.msra.mxu0 0
        %510 = vmatprep.subr.bf16.mxu0 0
        %511 = vmatpush1.bf16.msra.mxu0 0
        %512 = vmatprep.subr.bf16.mxu0 0
        %513 = vmatpush1.bf16.msra.mxu0 0
        %514 = vmatprep.subr.bf16.mxu0 0
        %515 = vmatpush1.bf16.msra.mxu0 0
        %516 = vmatprep.subr.bf16.mxu0 0
        %517 = vmatpush1.bf16.msra.mxu0 0
        %518 = vmatprep.subr.bf16.mxu0 0
        %519 = vmatpush1.bf16.msra.mxu0 0
        %520 = vmatprep.subr.bf16.mxu0 0
        %521 = vmatpush1.bf16.msra.mxu0 0
        %522 = vmatprep.subr.bf16.mxu0 0
        %523 = vmatpush1.bf16.msra.mxu0 0
        %524 = vmatprep.subr.bf16.mxu0 0
        %525 = vmatpush1.bf16.msra.mxu0 0
        %526 = vmatprep.subr.bf16.mxu0 0
        %527 = vmatpush1.bf16.msra.mxu0 0
        %528 = vmatprep.subr.bf16.mxu0 0
        %529 = vmatpush1.bf16.msra.mxu0 0
        %530 = vmatprep.mubr.bf16.mxu0 0
        %531 = vmatmul.mubr.bf16.gmra.mrb[0].mxu0 %v492
        %v532 = vpop.f32.mrb[0].mxu0
        %v533 = vadd.f32 0.0, %v532
        %v534 = vpop.f32.mrb[0].mxu0
        %v535 = vpop.f32.mrb[0].mxu0
        %v536 = vpop.f32.mrb[0].mxu0
        %537 = vdwg.mxu0
        %s539 = sor.u32 256, 121
        %540 = vrot.lane.b32.xlu0 %v533, %s539
        %v541 = vpop.permute.xlu0 %540
        %v543 = vsel %vm490, %v483, 0
        %v546 = vsel %vm494, %v485, 0
        %548 = vmatprep.subr.bf16.mxu0 0
        %549 = vmatpush1.bf16.msra.mxu0 %v546
        %550 = vmatprep.subr.bf16.mxu0 0
        %551 = vmatpush1.bf16.msra.mxu0 0
        %552 = vmatprep.subr.bf16.mxu0 0
        %553 = vmatpush1.bf16.msra.mxu0 0
        %554 = vmatprep.subr.bf16.mxu0 0
        %555 = vmatpush1.bf16.msra.mxu0 0
        %556 = vmatprep.subr.bf16.mxu0 0
        %557 = vmatpush1.bf16.msra.mxu0 0
        %558 = vmatprep.subr.bf16.mxu0 0
        %559 = vmatpush1.bf16.msra.mxu0 0
        %560 = vmatprep.subr.bf16.mxu0 0
        %561 = vmatpush1.bf16.msra.mxu0 0
        %562 = vmatprep.subr.bf16.mxu0 0
        %563 = vmatpush1.bf16.msra.mxu0 0
        %564 = vmatprep.subr.bf16.mxu0 0
        %565 = vmatpush1.bf16.msra.mxu0 0
        %566 = vmatprep.subr.bf16.mxu0 0
        %567 = vmatpush1.bf16.msra.mxu0 0
        %568 = vmatprep.subr.bf16.mxu0 0
        %569 = vmatpush1.bf16.msra.mxu0 0
        %570 = vmatprep.subr.bf16.mxu0 0
        %571 = vmatpush1.bf16.msra.mxu0 0
        %572 = vmatprep.subr.bf16.mxu0 0
        %573 = vmatpush1.bf16.msra.mxu0 0
        %574 = vmatprep.subr.bf16.mxu0 0
        %575 = vmatpush1.bf16.msra.mxu0 0
        %576 = vmatprep.subr.bf16.mxu0 0
        %577 = vmatpush1.bf16.msra.mxu0 0
        %578 = vmatprep.subr.bf16.mxu0 0
        %579 = vmatpush1.bf16.msra.mxu0 0
        %580 = vmatprep.mubr.bf16.mxu0 0
        %581 = vmatmul.mubr.bf16.gmra.mrb[0].mxu0 %v543
        %v582 = vpop.f32.mrb[0].mxu0
        %v583 = vadd.f32 %v541, %v582
        %v584 = vpop.f32.mrb[0].mxu0
        %v585 = vpop.f32.mrb[0].mxu0
        %v586 = vpop.f32.mrb[0].mxu0
        %587 = vdwg.mxu0
        %v588 = vsel %vm490, %v583, -inf
        %589 = vmax.xlane.f32.xlu0 %v588
        %v590 = vpop.xlane.xlu0 %589
        %v591 = vsub.f32 %v583, %v590
        %v592 = vmul.f32 %v591, 1.442695
        %v593 = vpow.pop %v592
        %v594 = vsel %vm490, %v593, 0.0
        %595 = vadd.xlane.f32.xlu0 %v594
        %v596 = vpop.xlane.xlu0 %595
        %v597 = vpack.c.bf16 %v593, %v593
        %v599 = vsel %vm490, %v597, 0
        %v602 = vsel %vm494, %v486, 0
        %604 = vmatprep.subr.bf16.mxu0 0
        %605 = vmatpush1.bf16.msra.mxu0 %v602
        %606 = vmatprep.subr.bf16.mxu0 0
        %607 = vmatpush1.bf16.msra.mxu0 0
        %608 = vmatprep.subr.bf16.mxu0 0
        %609 = vmatpush1.bf16.msra.mxu0 0
        %610 = vmatprep.subr.bf16.mxu0 0
        %611 = vmatpush1.bf16.msra.mxu0 0
        %612 = vmatprep.subr.bf16.mxu0 0
        %613 = vmatpush1.bf16.msra.mxu0 0
        %614 = vmatprep.subr.bf16.mxu0 0
        %615 = vmatpush1.bf16.msra.mxu0 0
        %616 = vmatprep.subr.bf16.mxu0 0
        %617 = vmatpush1.bf16.msra.mxu0 0
        %618 = vmatprep.subr.bf16.mxu0 0
        %619 = vmatpush1.bf16.msra.mxu0 0
        %620 = vmatprep.subr.bf16.mxu0 0
        %621 = vmatpush1.bf16.msra.mxu0 0
        %622 = vmatprep.subr.bf16.mxu0 0
        %623 = vmatpush1.bf16.msra.mxu0 0
        %624 = vmatprep.subr.bf16.mxu0 0
        %625 = vmatpush1.bf16.msra.mxu0 0
        %626 = vmatprep.subr.bf16.mxu0 0
        %627 = vmatpush1.bf16.msra.mxu0 0
        %628 = vmatprep.subr.bf16.mxu0 0
        %629 = vmatpush1.bf16.msra.mxu0 0
        %630 = vmatprep.subr.bf16.mxu0 0
        %631 = vmatpush1.bf16.msra.mxu0 0
        %632 = vmatprep.subr.bf16.mxu0 0
        %633 = vmatpush1.bf16.msra.mxu0 0
        %634 = vmatprep.subr.bf16.mxu0 0
        %635 = vmatpush1.bf16.msra.mxu0 0
        %636 = vmatprep.mubr.bf16.mxu0 0
        %637 = vmatmul.mubr.bf16.gmra.mrb[0].mxu0 %v599
        %v638 = vpop.f32.mrb[0].mxu0
        %v639 = vadd.f32 0.0, %v638
        %v640 = vpop.f32.mrb[0].mxu0
        %v641 = vpop.f32.mrb[0].mxu0
        %v642 = vpop.f32.mrb[0].mxu0
        %643 = vdwg.mxu0
        %v644 = vrcp.pop %v596
        %v645 = vmul.f32 %v639, %v644
        %s646 = scalar_lea.vmem %s394, 4 [#allocation2]
        %v647 = vld [vmem:[%s646] sm:$0xf]
        %s648 = scalar_lea.vmem %s403, 4 [#allocation5]
        %v649 = vld [vmem:[%s648] sm:$0xf]
        %s650 = scalar_lea.vmem %s412, 4 [#allocation7]
        %v651 = vld [vmem:[%s650] sm:$0xf]
        %s652 = scalar_lea.vmem %s421, 4 [#allocation8]
        %v653 = vld [vmem:[%s652] sm:$0xf]
        %s654 = sadd.s32 %s476, 1
        %s655 = smul.addr %s654, 4
        %s656 = scalar_lea.vmem [#allocation10], %s655
        %v657 = vld [vmem:[%s656] sm:$0xf]
        %v659 = vsel %vm490, %v649, 0
        %v662 = vsel %vm494, %v657, 0
        %664 = vmatprep.subr.bf16.mxu0 0
        %665 = vmatpush1.bf16.msra.mxu0 %v662
        %666 = vmatprep.subr.bf16.mxu0 0
        %667 = vmatpush1.bf16.msra.mxu0 0
        %668 = vmatprep.subr.bf16.mxu0 0
        %669 = vmatpush1.bf16.msra.mxu0 0
        %670 = vmatprep.subr.bf16.mxu0 0
        %671 = vmatpush1.bf16.msra.mxu0 0
        %672 = vmatprep.subr.bf16.mxu0 0
        %673 = vmatpush1.bf16.msra.mxu0 0
        %674 = vmatprep.subr.bf16.mxu0 0
        %675 = vmatpush1.bf16.msra.mxu0 0
        %676 = vmatprep.subr.bf16.mxu0 0
        %677 = vmatpush1.bf16.msra.mxu0 0
        %678 = vmatprep.subr.bf16.mxu0 0
        %679 = vmatpush1.bf16.msra.mxu0 0
        %680 = vmatprep.subr.bf16.mxu0 0
        %681 = vmatpush1.bf16.msra.mxu0 0
        %682 = vmatprep.subr.bf16.mxu0 0
        %683 = vmatpush1.bf16.msra.mxu0 0
        %684 = vmatprep.subr.bf16.mxu0 0
        %685 = vmatpush1.bf16.msra.mxu0 0
        %686 = vmatprep.subr.bf16.mxu0 0
        %687 = vmatpush1.bf16.msra.mxu0 0
        %688 = vmatprep.subr.bf16.mxu0 0
        %689 = vmatpush1.bf16.msra.mxu0 0
        %690 = vmatprep.subr.bf16.mxu0 0
        %691 = vmatpush1.bf16.msra.mxu0 0
        %692 = vmatprep.subr.bf16.mxu0 0
        %693 = vmatpush1.bf16.msra.mxu0 0
        %694 = vmatprep.subr.bf16.mxu0 0
        %695 = vmatpush1.bf16.msra.mxu0 0
        %696 = vmatprep.mubr.bf16.mxu0 0
        %697 = vmatmul.mubr.bf16.gmra.mrb[0].mxu0 %v659
        %v698 = vpop.f32.mrb[0].mxu0
        %v699 = vadd.f32 0.0, %v698
        %v700 = vpop.f32.mrb[0].mxu0
        %v701 = vpop.f32.mrb[0].mxu0
        %v702 = vpop.f32.mrb[0].mxu0
        %703 = vdwg.mxu0
        %s705 = sor.u32 256, 121
        %706 = vrot.lane.b32.xlu0 %v699, %s705
        %v707 = vpop.permute.xlu0 %706
        %v709 = vsel %vm490, %v647, 0
        %v712 = vsel %vm494, %v651, 0
        %714 = vmatprep.subr.bf16.mxu0 0
        %715 = vmatpush1.bf16.msra.mxu0 %v712
        %716 = vmatprep.subr.bf16.mxu0 0
        %717 = vmatpush1.bf16.msra.mxu0 0
        %718 = vmatprep.subr.bf16.mxu0 0
        %719 = vmatpush1.bf16.msra.mxu0 0
        %720 = vmatprep.subr.bf16.mxu0 0
        %721 = vmatpush1.bf16.msra.mxu0 0
        %722 = vmatprep.subr.bf16.mxu0 0
        %723 = vmatpush1.bf16.msra.mxu0 0
        %724 = vmatprep.subr.bf16.mxu0 0
        %725 = vmatpush1.bf16.msra.mxu0 0
        %726 = vmatprep.subr.bf16.mxu0 0
        %727 = vmatpush1.bf16.msra.mxu0 0
        %728 = vmatprep.subr.bf16.mxu0 0
        %729 = vmatpush1.bf16.msra.mxu0 0
        %730 = vmatprep.subr.bf16.mxu0 0
        %731 = vmatpush1.bf16.msra.mxu0 0
        %732 = vmatprep.subr.bf16.mxu0 0
        %733 = vmatpush1.bf16.msra.mxu0 0
        %734 = vmatprep.subr.bf16.mxu0 0
        %735 = vmatpush1.bf16.msra.mxu0 0
        %736 = vmatprep.subr.bf16.mxu0 0
        %737 = vmatpush1.bf16.msra.mxu0 0
        %738 = vmatprep.subr.bf16.mxu0 0
        %739 = vmatpush1.bf16.msra.mxu0 0
        %740 = vmatprep.subr.bf16.mxu0 0
        %741 = vmatpush1.bf16.msra.mxu0 0
        %742 = vmatprep.subr.bf16.mxu0 0
        %743 = vmatpush1.bf16.msra.mxu0 0
        %744 = vmatprep.subr.bf16.mxu0 0
        %745 = vmatpush1.bf16.msra.mxu0 0
        %746 = vmatprep.mubr.bf16.mxu0 0
        %747 = vmatmul.mubr.bf16.gmra.mrb[0].mxu0 %v709
        %v748 = vpop.f32.mrb[0].mxu0
        %v749 = vadd.f32 %v707, %v748
        %v750 = vpop.f32.mrb[0].mxu0
        %v751 = vpop.f32.mrb[0].mxu0
        %v752 = vpop.f32.mrb[0].mxu0
        %753 = vdwg.mxu0
        %v754 = vsel %vm490, %v749, -inf
        %755 = vmax.xlane.f32.xlu0 %v754
        %v756 = vpop.xlane.xlu0 %755
        %v757 = vsub.f32 %v749, %v756
        %v758 = vmul.f32 %v757, 1.442695
        %v759 = vpow.pop %v758
        %v760 = vsel %vm490, %v759, 0.0
        %761 = vadd.xlane.f32.xlu0 %v760
        %v762 = vpop.xlane.xlu0 %761
        %v763 = vpack.c.bf16 %v759, %v759
        %v765 = vsel %vm490, %v763, 0
        %v768 = vsel %vm494, %v653, 0
        %770 = vmatprep.subr.bf16.mxu0 0
        %771 = vmatpush1.bf16.msra.mxu0 %v768
        %772 = vmatprep.subr.bf16.mxu0 0
        %773 = vmatpush1.bf16.msra.mxu0 0
        %774 = vmatprep.subr.bf16.mxu0 0
        %775 = vmatpush1.bf16.msra.mxu0 0
        %776 = vmatprep.subr.bf16.mxu0 0
        %777 = vmatpush1.bf16.msra.mxu0 0
        %778 = vmatprep.subr.bf16.mxu0 0
        %779 = vmatpush1.bf16.msra.mxu0 0
        %780 = vmatprep.subr.bf16.mxu0 0
        %781 = vmatpush1.bf16.msra.mxu0 0
        %782 = vmatprep.subr.bf16.mxu0 0
        %783 = vmatpush1.bf16.msra.mxu0 0
        %784 = vmatprep.subr.bf16.mxu0 0
        %785 = vmatpush1.bf16.msra.mxu0 0
        %786 = vmatprep.subr.bf16.mxu0 0
        %787 = vmatpush1.bf16.msra.mxu0 0
        %788 = vmatprep.subr.bf16.mxu0 0
        %789 = vmatpush1.bf16.msra.mxu0 0
        %790 = vmatprep.subr.bf16.mxu0 0
        %791 = vmatpush1.bf16.msra.mxu0 0
        %792 = vmatprep.subr.bf16.mxu0 0
        %793 = vmatpush1.bf16.msra.mxu0 0
        %794 = vmatprep.subr.bf16.mxu0 0
        %795 = vmatpush1.bf16.msra.mxu0 0
        %796 = vmatprep.subr.bf16.mxu0 0
        %797 = vmatpush1.bf16.msra.mxu0 0
        %798 = vmatprep.subr.bf16.mxu0 0
        %799 = vmatpush1.bf16.msra.mxu0 0
        %800 = vmatprep.subr.bf16.mxu0 0
        %801 = vmatpush1.bf16.msra.mxu0 0
        %802 = vmatprep.mubr.bf16.mxu0 0
        %803 = vmatmul.mubr.bf16.gmra.mrb[0].mxu0 %v765
        %v804 = vpop.f32.mrb[0].mxu0
        %v805 = vadd.f32 0.0, %v804
        %v806 = vpop.f32.mrb[0].mxu0
        %v807 = vpop.f32.mrb[0].mxu0
        %v808 = vpop.f32.mrb[0].mxu0
        %809 = vdwg.mxu0
        %v810 = vrcp.pop %v762
        %v811 = vmul.f32 %v805, %v810
        %s812 = scalar_lea.vmem %s394, 8 [#allocation2]
        %v813 = vld [vmem:[%s812] sm:$0xf]
        %s814 = scalar_lea.vmem %s403, 8 [#allocation5]
        %v815 = vld [vmem:[%s814] sm:$0xf]
        %s816 = scalar_lea.vmem %s412, 8 [#allocation7]
        %v817 = vld [vmem:[%s816] sm:$0xf]
        %s818 = scalar_lea.vmem %s421, 8 [#allocation8]
        %v819 = vld [vmem:[%s818] sm:$0xf]
        %s820 = sadd.s32 %s476, 2
        %s821 = smul.addr %s820, 4
        %s822 = scalar_lea.vmem [#allocation10], %s821
        %v823 = vld [vmem:[%s822] sm:$0xf]
        %v825 = vsel %vm490, %v815, 0
        %v828 = vsel %vm494, %v823, 0
        %830 = vmatprep.subr.bf16.mxu0 0
        %831 = vmatpush1.bf16.msra.mxu0 %v828
        %832 = vmatprep.subr.bf16.mxu0 0
        %833 = vmatpush1.bf16.msra.mxu0 0
        %834 = vmatprep.subr.bf16.mxu0 0
        %835 = vmatpush1.bf16.msra.mxu0 0
        %836 = vmatprep.subr.bf16.mxu0 0
        %837 = vmatpush1.bf16.msra.mxu0 0
        %838 = vmatprep.subr.bf16.mxu0 0
        %839 = vmatpush1.bf16.msra.mxu0 0
        %840 = vmatprep.subr.bf16.mxu0 0
        %841 = vmatpush1.bf16.msra.mxu0 0
        %842 = vmatprep.subr.bf16.mxu0 0
        %843 = vmatpush1.bf16.msra.mxu0 0
        %844 = vmatprep.subr.bf16.mxu0 0
        %845 = vmatpush1.bf16.msra.mxu0 0
        %846 = vmatprep.subr.bf16.mxu0 0
        %847 = vmatpush1.bf16.msra.mxu0 0
        %848 = vmatprep.subr.bf16.mxu0 0
        %849 = vmatpush1.bf16.msra.mxu0 0
        %850 = vmatprep.subr.bf16.mxu0 0
        %851 = vmatpush1.bf16.msra.mxu0 0
        %852 = vmatprep.subr.bf16.mxu0 0
        %853 = vmatpush1.bf16.msra.mxu0 0
        %854 = vmatprep.subr.bf16.mxu0 0
        %855 = vmatpush1.bf16.msra.mxu0 0
        %856 = vmatprep.subr.bf16.mxu0 0
        %857 = vmatpush1.bf16.msra.mxu0 0
        %858 = vmatprep.subr.bf16.mxu0 0
        %859 = vmatpush1.bf16.msra.mxu0 0
        %860 = vmatprep.subr.bf16.mxu0 0
        %861 = vmatpush1.bf16.msra.mxu0 0
        %862 = vmatprep.mubr.bf16.mxu0 0
        %863 = vmatmul.mubr.bf16.gmra.mrb[0].mxu0 %v825
        %v864 = vpop.f32.mrb[0].mxu0
        %v865 = vadd.f32 0.0, %v864
        %v866 = vpop.f32.mrb[0].mxu0
        %v867 = vpop.f32.mrb[0].mxu0
        %v868 = vpop.f32.mrb[0].mxu0
        %869 = vdwg.mxu0
        %s871 = sor.u32 256, 121
        %872 = vrot.lane.b32.xlu0 %v865, %s871
        %v873 = vpop.permute.xlu0 %872
        %v875 = vsel %vm490, %v813, 0
        %v878 = vsel %vm494, %v817, 0
        %880 = vmatprep.subr.bf16.mxu0 0
        %881 = vmatpush1.bf16.msra.mxu0 %v878
        %882 = vmatprep.subr.bf16.mxu0 0
        %883 = vmatpush1.bf16.msra.mxu0 0
        %884 = vmatprep.subr.bf16.mxu0 0
        %885 = vmatpush1.bf16.msra.mxu0 0
        %886 = vmatprep.subr.bf16.mxu0 0
        %887 = vmatpush1.bf16.msra.mxu0 0
        %888 = vmatprep.subr.bf16.mxu0 0
        %889 = vmatpush1.bf16.msra.mxu0 0
        %890 = vmatprep.subr.bf16.mxu0 0
        %891 = vmatpush1.bf16.msra.mxu0 0
        %892 = vmatprep.subr.bf16.mxu0 0
        %893 = vmatpush1.bf16.msra.mxu0 0
        %894 = vmatprep.subr.bf16.mxu0 0
        %895 = vmatpush1.bf16.msra.mxu0 0
        %896 = vmatprep.subr.bf16.mxu0 0
        %897 = vmatpush1.bf16.msra.mxu0 0
        %898 = vmatprep.subr.bf16.mxu0 0
        %899 = vmatpush1.bf16.msra.mxu0 0
        %900 = vmatprep.subr.bf16.mxu0 0
        %901 = vmatpush1.bf16.msra.mxu0 0
        %902 = vmatprep.subr.bf16.mxu0 0
        %903 = vmatpush1.bf16.msra.mxu0 0
        %904 = vmatprep.subr.bf16.mxu0 0
        %905 = vmatpush1.bf16.msra.mxu0 0
        %906 = vmatprep.subr.bf16.mxu0 0
        %907 = vmatpush1.bf16.msra.mxu0 0
        %908 = vmatprep.subr.bf16.mxu0 0
        %909 = vmatpush1.bf16.msra.mxu0 0
        %910 = vmatprep.subr.bf16.mxu0 0
        %911 = vmatpush1.bf16.msra.mxu0 0
        %912 = vmatprep.mubr.bf16.mxu0 0
        %913 = vmatmul.mubr.bf16.gmra.mrb[0].mxu0 %v875
        %v914 = vpop.f32.mrb[0].mxu0
        %v915 = vadd.f32 %v873, %v914
        %v916 = vpop.f32.mrb[0].mxu0
        %v917 = vpop.f32.mrb[0].mxu0
        %v918 = vpop.f32.mrb[0].mxu0
        %919 = vdwg.mxu0
        %v920 = vsel %vm490, %v915, -inf
        %921 = vmax.xlane.f32.xlu0 %v920
        %v922 = vpop.xlane.xlu0 %921
        %v923 = vsub.f32 %v915, %v922
        %v924 = vmul.f32 %v923, 1.442695
        %v925 = vpow.pop %v924
        %v926 = vsel %vm490, %v925, 0.0
        %927 = vadd.xlane.f32.xlu0 %v926
        %v928 = vpop.xlane.xlu0 %927
        %v929 = vpack.c.bf16 %v925, %v925
        %v931 = vsel %vm490, %v929, 0
        %v934 = vsel %vm494, %v819, 0
        %936 = vmatprep.subr.bf16.mxu0 0
        %937 = vmatpush1.bf16.msra.mxu0 %v934
        %938 = vmatprep.subr.bf16.mxu0 0
        %939 = vmatpush1.bf16.msra.mxu0 0
        %940 = vmatprep.subr.bf16.mxu0 0
        %941 = vmatpush1.bf16.msra.mxu0 0
        %942 = vmatprep.subr.bf16.mxu0 0
        %943 = vmatpush1.bf16.msra.mxu0 0
        %944 = vmatprep.subr.bf16.mxu0 0
        %945 = vmatpush1.bf16.msra.mxu0 0
        %946 = vmatprep.subr.bf16.mxu0 0
        %947 = vmatpush1.bf16.msra.mxu0 0
        %948 = vmatprep.subr.bf16.mxu0 0
        %949 = vmatpush1.bf16.msra.mxu0 0
        %950 = vmatprep.subr.bf16.mxu0 0
        %951 = vmatpush1.bf16.msra.mxu0 0
        %952 = vmatprep.subr.bf16.mxu0 0
        %953 = vmatpush1.bf16.msra.mxu0 0
        %954 = vmatprep.subr.bf16.mxu0 0
        %955 = vmatpush1.bf16.msra.mxu0 0
        %956 = vmatprep.subr.bf16.mxu0 0
        %957 = vmatpush1.bf16.msra.mxu0 0
        %958 = vmatprep.subr.bf16.mxu0 0
        %959 = vmatpush1.bf16.msra.mxu0 0
        %960 = vmatprep.subr.bf16.mxu0 0
        %961 = vmatpush1.bf16.msra.mxu0 0
        %962 = vmatprep.subr.bf16.mxu0 0
        %963 = vmatpush1.bf16.msra.mxu0 0
        %964 = vmatprep.subr.bf16.mxu0 0
        %965 = vmatpush1.bf16.msra.mxu0 0
        %966 = vmatprep.subr.bf16.mxu0 0
        %967 = vmatpush1.bf16.msra.mxu0 0
        %968 = vmatprep.mubr.bf16.mxu0 0
        %969 = vmatmul.mubr.bf16.gmra.mrb[0].mxu0 %v931
        %v970 = vpop.f32.mrb[0].mxu0
        %v971 = vadd.f32 0.0, %v970
        %v972 = vpop.f32.mrb[0].mxu0
        %v973 = vpop.f32.mrb[0].mxu0
        %v974 = vpop.f32.mrb[0].mxu0
        %975 = vdwg.mxu0
        %v976 = vrcp.pop %v928
        %v977 = vmul.f32 %v971, %v976
        %s978 = scalar_lea.vmem %s394, 12 [#allocation2]
        %v979 = vld [vmem:[%s978] sm:$0xf]
        %s980 = scalar_lea.vmem %s403, 12 [#allocation5]
        %v981 = vld [vmem:[%s980] sm:$0xf]
        %s982 = scalar_lea.vmem %s412, 12 [#allocation7]
        %v983 = vld [vmem:[%s982] sm:$0xf]
        %s984 = scalar_lea.vmem %s421, 12 [#allocation8]
        %v985 = vld [vmem:[%s984] sm:$0xf]
        %s986 = sadd.s32 %s476, 3
        %s987 = smul.addr %s986, 4
        %s988 = scalar_lea.vmem [#allocation10], %s987
        %v989 = vld [vmem:[%s988] sm:$0xf]
        %v991 = vsel %vm490, %v981, 0
        %v994 = vsel %vm494, %v989, 0
        %996 = vmatprep.subr.bf16.mxu0 0
        %997 = vmatpush1.bf16.msra.mxu0 %v994
        %998 = vmatprep.subr.bf16.mxu0 0
        %999 = vmatpush1.bf16.msra.mxu0 0
        %1000 = vmatprep.subr.bf16.mxu0 0
        %1001 = vmatpush1.bf16.msra.mxu0 0
        %1002 = vmatprep.subr.bf16.mxu0 0
        %1003 = vmatpush1.bf16.msra.mxu0 0
        %1004 = vmatprep.subr.bf16.mxu0 0
        %1005 = vmatpush1.bf16.msra.mxu0 0
        %1006 = vmatprep.subr.bf16.mxu0 0
        %1007 = vmatpush1.bf16.msra.mxu0 0
        %1008 = vmatprep.subr.bf16.mxu0 0
        %1009 = vmatpush1.bf16.msra.mxu0 0
        %1010 = vmatprep.subr.bf16.mxu0 0
        %1011 = vmatpush1.bf16.msra.mxu0 0
        %1012 = vmatprep.subr.bf16.mxu0 0
        %1013 = vmatpush1.bf16.msra.mxu0 0
        %1014 = vmatprep.subr.bf16.mxu0 0
        %1015 = vmatpush1.bf16.msra.mxu0 0
        %1016 = vmatprep.subr.bf16.mxu0 0
        %1017 = vmatpush1.bf16.msra.mxu0 0
        %1018 = vmatprep.subr.bf16.mxu0 0
        %1019 = vmatpush1.bf16.msra.mxu0 0
        %1020 = vmatprep.subr.bf16.mxu0 0
        %1021 = vmatpush1.bf16.msra.mxu0 0
        %1022 = vmatprep.subr.bf16.mxu0 0
        %1023 = vmatpush1.bf16.msra.mxu0 0
        %1024 = vmatprep.subr.bf16.mxu0 0
        %1025 = vmatpush1.bf16.msra.mxu0 0
        %1026 = vmatprep.subr.bf16.mxu0 0
        %1027 = vmatpush1.bf16.msra.mxu0 0
        %1028 = vmatprep.mubr.bf16.mxu0 0
        %1029 = vmatmul.mubr.bf16.gmra.mrb[0].mxu0 %v991
        %v1030 = vpop.f32.mrb[0].mxu0
        %v1031 = vadd.f32 0.0, %v1030
        %v1032 = vpop.f32.mrb[0].mxu0
        %v1033 = vpop.f32.mrb[0].mxu0
        %v1034 = vpop.f32.mrb[0].mxu0
        %1035 = vdwg.mxu0
        %s1037 = sor.u32 256, 121
        %1038 = vrot.lane.b32.xlu0 %v1031, %s1037
        %v1039 = vpop.permute.xlu0 %1038
        %v1041 = vsel %vm490, %v979, 0
        %v1044 = vsel %vm494, %v983, 0
        %1046 = vmatprep.subr.bf16.mxu0 0
        %1047 = vmatpush1.bf16.msra.mxu0 %v1044
        %1048 = vmatprep.subr.bf16.mxu0 0
        %1049 = vmatpush1.bf16.msra.mxu0 0
        %1050 = vmatprep.subr.bf16.mxu0 0
        %1051 = vmatpush1.bf16.msra.mxu0 0
        %1052 = vmatprep.subr.bf16.mxu0 0
        %1053 = vmatpush1.bf16.msra.mxu0 0
        %1054 = vmatprep.subr.bf16.mxu0 0
        %1055 = vmatpush1.bf16.msra.mxu0 0
        %1056 = vmatprep.subr.bf16.mxu0 0
        %1057 = vmatpush1.bf16.msra.mxu0 0
        %1058 = vmatprep.subr.bf16.mxu0 0
        %1059 = vmatpush1.bf16.msra.mxu0 0
        %1060 = vmatprep.subr.bf16.mxu0 0
        %1061 = vmatpush1.bf16.msra.mxu0 0
        %1062 = vmatprep.subr.bf16.mxu0 0
        %1063 = vmatpush1.bf16.msra.mxu0 0
        %1064 = vmatprep.subr.bf16.mxu0 0
        %1065 = vmatpush1.bf16.msra.mxu0 0
        %1066 = vmatprep.subr.bf16.mxu0 0
        %1067 = vmatpush1.bf16.msra.mxu0 0
        %1068 = vmatprep.subr.bf16.mxu0 0
        %1069 = vmatpush1.bf16.msra.mxu0 0
        %1070 = vmatprep.subr.bf16.mxu0 0
        %1071 = vmatpush1.bf16.msra.mxu0 0
        %1072 = vmatprep.subr.bf16.mxu0 0
        %1073 = vmatpush1.bf16.msra.mxu0 0
        %1074 = vmatprep.subr.bf16.mxu0 0
        %1075 = vmatpush1.bf16.msra.mxu0 0
        %1076 = vmatprep.subr.bf16.mxu0 0
        %1077 = vmatpush1.bf16.msra.mxu0 0
        %1078 = vmatprep.mubr.bf16.mxu0 0
        %1079 = vmatmul.mubr.bf16.gmra.mrb[0].mxu0 %v1041
        %v1080 = vpop.f32.mrb[0].mxu0
        %v1081 = vadd.f32 %v1039, %v1080
        %v1082 = vpop.f32.mrb[0].mxu0
        %v1083 = vpop.f32.mrb[0].mxu0
        %v1084 = vpop.f32.mrb[0].mxu0
        %1085 = vdwg.mxu0
        %v1086 = vsel %vm490, %v1081, -inf
        %1087 = vmax.xlane.f32.xlu0 %v1086
        %v1088 = vpop.xlane.xlu0 %1087
        %v1089 = vsub.f32 %v1081, %v1088
        %v1090 = vmul.f32 %v1089, 1.442695
        %v1091 = vpow.pop %v1090
        %v1092 = vsel %vm490, %v1091, 0.0
        %1093 = vadd.xlane.f32.xlu0 %v1092
        %v1094 = vpop.xlane.xlu0 %1093
        %v1095 = vpack.c.bf16 %v1091, %v1091
        %v1097 = vsel %vm490, %v1095, 0
        %v1100 = vsel %vm494, %v985, 0
        %1102 = vmatprep.subr.bf16.mxu0 0
        %1103 = vmatpush1.bf16.msra.mxu0 %v1100
        %1104 = vmatprep.subr.bf16.mxu0 0
        %1105 = vmatpush1.bf16.msra.mxu0 0
        %1106 = vmatprep.subr.bf16.mxu0 0
        %1107 = vmatpush1.bf16.msra.mxu0 0
        %1108 = vmatprep.subr.bf16.mxu0 0
        %1109 = vmatpush1.bf16.msra.mxu0 0
        %1110 = vmatprep.subr.bf16.mxu0 0
        %1111 = vmatpush1.bf16.msra.mxu0 0
        %1112 = vmatprep.subr.bf16.mxu0 0
        %1113 = vmatpush1.bf16.msra.mxu0 0
        %1114 = vmatprep.subr.bf16.mxu0 0
        %1115 = vmatpush1.bf16.msra.mxu0 0
        %1116 = vmatprep.subr.bf16.mxu0 0
        %1117 = vmatpush1.bf16.msra.mxu0 0
        %1118 = vmatprep.subr.bf16.mxu0 0
        %1119 = vmatpush1.bf16.msra.mxu0 0
        %1120 = vmatprep.subr.bf16.mxu0 0
        %1121 = vmatpush1.bf16.msra.mxu0 0
        %1122 = vmatprep.subr.bf16.mxu0 0
        %1123 = vmatpush1.bf16.msra.mxu0 0
        %1124 = vmatprep.subr.bf16.mxu0 0
        %1125 = vmatpush1.bf16.msra.mxu0 0
        %1126 = vmatprep.subr.bf16.mxu0 0
        %1127 = vmatpush1.bf16.msra.mxu0 0
        %1128 = vmatprep.subr.bf16.mxu0 0
        %1129 = vmatpush1.bf16.msra.mxu0 0
        %1130 = vmatprep.subr.bf16.mxu0 0
        %1131 = vmatpush1.bf16.msra.mxu0 0
        %1132 = vmatprep.subr.bf16.mxu0 0
        %1133 = vmatpush1.bf16.msra.mxu0 0
        %1134 = vmatprep.mubr.bf16.mxu0 0
        %1135 = vmatmul.mubr.bf16.gmra.mrb[0].mxu0 %v1097
        %v1136 = vpop.f32.mrb[0].mxu0
        %v1137 = vadd.f32 0.0, %v1136
        %v1138 = vpop.f32.mrb[0].mxu0
        %v1139 = vpop.f32.mrb[0].mxu0
        %v1140 = vpop.f32.mrb[0].mxu0
        %1141 = vdwg.mxu0
        %v1142 = vrcp.pop %v1094
        %v1143 = vmul.f32 %v1137, %v1142
        %1145 = vrot.lane.b32.xlu0 %v811, 8
        %v1146 = vpop.permute.xlu0 %1145
        %1149 = vrot.lane.b32.xlu0 %v977, 16
        %v1150 = vpop.permute.xlu0 %1149
        %1153 = vrot.lane.b32.xlu0 %v1143, 24
        %v1154 = vpop.permute.xlu0 %1153
        %v1156 = vsel %vm490, %v645, %v1146
        %vm1157 = vcmask 130048
        %v1158 = vsel %vm1157, %v1156, %v1150
        %vm1159 = vcmask 195584
        %v1160 = vsel %vm1159, %v1158, %v1154
        %v1161 = vpack.c.bf16 %v1160, %v1160
        %v1166 = vunpack.c.l.b16 %v479
        %v1167 = vunpack.c.l.b16 %v480
        %v1168 = vunpack.c.l.b16 %v481
        %v1169 = vunpack.c.l.b16 %v482
        %v1170 = vpack.c.b16 %v1167, %v1166
        %v1171 = vpack.c.b16 %v1169, %v1168
        %vm1174 = vcmask 261120
        %v1176 = vsel %vm1174, %v1161, 0
        %1178 = vmatprep.subr.bf16.mxu0 0
        %1179 = vmatpush1.bf16.msra.mxu0 %v1170
        %1180 = vmatprep.subr.bf16.mxu0 0
        %1181 = vmatpush1.bf16.msra.mxu0 %v1171
        %1182 = vmatprep.subr.bf16.mxu0 0
        %1183 = vmatpush1.bf16.msra.mxu0 0
        %1184 = vmatprep.subr.bf16.mxu0 0
        %1185 = vmatpush1.bf16.msra.mxu0 0
        %1186 = vmatprep.subr.bf16.mxu0 0
        %1187 = vmatpush1.bf16.msra.mxu0 0
        %1188 = vmatprep.subr.bf16.mxu0 0
        %1189 = vmatpush1.bf16.msra.mxu0 0
        %1190 = vmatprep.subr.bf16.mxu0 0
        %1191 = vmatpush1.bf16.msra.mxu0 0
        %1192 = vmatprep.subr.bf16.mxu0 0
        %1193 = vmatpush1.bf16.msra.mxu0 0
        %1194 = vmatprep.subr.bf16.mxu0 0
        %1195 = vmatpush1.bf16.msra.mxu0 0
        %1196 = vmatprep.subr.bf16.mxu0 0
        %1197 = vmatpush1.bf16.msra.mxu0 0
        %1198 = vmatprep.subr.bf16.mxu0 0
        %1199 = vmatpush1.bf16.msra.mxu0 0
        %1200 = vmatprep.subr.bf16.mxu0 0
        %1201 = vmatpush1.bf16.msra.mxu0 0
        %1202 = vmatprep.subr.bf16.mxu0 0
        %1203 = vmatpush1.bf16.msra.mxu0 0
        %1204 = vmatprep.subr.bf16.mxu0 0
        %1205 = vmatpush1.bf16.msra.mxu0 0
        %1206 = vmatprep.subr.bf16.mxu0 0
        %1207 = vmatpush1.bf16.msra.mxu0 0
        %1208 = vmatprep.subr.bf16.mxu0 0
        %1209 = vmatpush1.bf16.msra.mxu0 0
        %1210 = vmatprep.mubr.bf16.mxu0 0
        %1211 = vmatmul.mubr.bf16.gmra.mrb[0].mxu0 %v1176
        %v1212 = vpop.f32.mrb[0].mxu0
        %v1213 = vadd.f32 0.0, %v1212
        %v1214 = vpop.f32.mrb[0].mxu0
        %v1215 = vpop.f32.mrb[0].mxu0
        %v1216 = vpop.f32.mrb[0].mxu0
        %1217 = vdwg.mxu0
        %p1218 = scmp.eq.s32.totalorder %s37, 0
        // Predicated region
        $region69: #{tpu_custom_call.1} parent=47 // pred_check
          %p1219 = pneg %p1218
        $region70: #{tpu_custom_call.1} parent=47 // pred_check_branch
          %1221 = sbr.rel (%p1219) target = $region72
        $region71: #{tpu_custom_call.1} parent=47 // pred_region
          %v1222 = vld [vmem:[%s6] sm:$0x1]
          %v1224 = vlaneseq
          %v1225 = vshrl.u32 %v1224, 7
          %v1226 = vsub.s32 0, %v1225
          %v1227 = vrot.slane %v1222, %v1226
          %v1229 = vadd.f32 %v1213, %v1227
          %1230 = vst.msk [vmem:[%s470] sm:$0xff] %vm1174, %v1229
        $region72: #{tpu_custom_call.1} parent=47 // pred_fallthru
          _
        %p1231 = scmp.gt.s32.totalorder %s37, 0
        // Predicated region
        $region73: #{tpu_custom_call.1} parent=47 // pred_check
          %p1232 = pneg %p1231
        $region74: #{tpu_custom_call.1} parent=47 // pred_check_branch
          %1234 = sbr.rel (%p1232) target = $region76
        $region75: #{tpu_custom_call.1} parent=47 // pred_region
          %v1235 = vld [vmem:[%s470] sm:$0xff]
          %v1236 = vadd.f32 %v1235, %v1213
          %1237 = vst.msk [vmem:[%s470] sm:$0xff] %vm1174, %v1236
        $region76: #{tpu_custom_call.1} parent=47 // pred_fallthru
          _
        %s1238 = sand.u32 %s238, 1
        %s1239 = scalar_lea.sflag [#allocation4], %s1238
        %s1240 = sand.u32 %s238, 1
        %s1241 = smul.addr %s1240, 8
        %s1242 = scalar_lea.vmem [#allocation11], %s1241
        // Predicated region
        $region77: #{tpu_custom_call.1} parent=47 // pred_check
          %p1243 = pneg %p248
        $region78: #{tpu_custom_call.1} parent=47 // pred_check_branch
          %1245 = sbr.rel (%p1243) target = $region80
        $region79: #{tpu_custom_call.1} parent=47 // pred_region
          %s1247 = ssub.s32 128, 128
          %1248 = vsyncadd %s1239, %s1247
          %s1249 = sadd.s32 %s36, %s35
          %s1250 = smul.addr %s1249, 128
          %s1251 = scalar_lea.hbm %s7, %s1250
          %s1253 = sshll.u32 %s1242, 4
          %s1254 = int_to_ptr.vmem [resolvable:$true] %s1253
          %1256 = dma.vmem_to_hbm [thread:$0]  %s1254, 128, %s1251, %s1239
        $region80: #{tpu_custom_call.1} parent=47 // pred_fallthru
          _
      $region48: #{tpu_custom_call.1} parent=5 // pred_fallthru
        _
      %p1257 = scmp.le.s32.totalorder 2, %s25
      // Predicated region
      $region81: #{tpu_custom_call.1} parent=5 // pred_check
        %p1258 = pneg %p1257
      $region82: #{tpu_custom_call.1} parent=5 // pred_check_branch
        %1260 = sbr.rel (%p1258) target = $region84
      $region83: #{tpu_custom_call.1} parent=5 // pred_region
        %s1261 = ssub.s32 %s25, 2
        // Predicated region
        $region85: #{tpu_custom_call.1} parent=83 // pred_check
          %p1262 = pneg %p254
        $region86: #{tpu_custom_call.1} parent=83 // pred_check_branch
          %1264 = sbr.rel (%p1262) target = $region88
        $region87: #{tpu_custom_call.1} parent=83 // pred_region
          %s1265 = sand.u32 %s239, 1
          %s1266 = scalar_lea.sflag [#allocation4], %s1265
          %s1267 = sand.u32 %s239, 1
          %s1268 = smul.addr %s1267, 8
          %s1269 = scalar_lea.vmem [#allocation11], %s1268
          %1270 = dma.done %s1266, 128
        $region88: #{tpu_custom_call.1} parent=83 // pred_fallthru
          _
      $region84: #{tpu_custom_call.1} parent=5 // pred_fallthru
        _
    $region6: #{tpu_custom_call.1} parent=1 // loop_footer
      %s29 = sadd.s32 1, %s25
    $region7: #{tpu_custom_call.1} parent=1 // loop_footer_branch
      %24 = sbr.rel target = $region3
    $region8: #{tpu_custom_call.1} parent=1 // loop_exit
      _
    %1271 = vsyncpa [#allocation3], 1
    %s1272 = scalar_lea.sflag [#allocation3], 1
    %1273 = vsyncpa %s1272, 1
    %1274 = vsyncpa [#allocation6], 1
    %s1275 = scalar_lea.sflag [#allocation6], 1
    %1276 = vsyncpa %s1275, 1
    %1277 = vsyncpa [#allocation9], 1
    %s1278 = scalar_lea.sflag [#allocation9], 1
    %1279 = vsyncpa %s1278, 1
    %1280 = vsyncpa [#allocation4], 1
    %s1281 = scalar_lea.sflag [#allocation4], 1
    %1282 = vsyncpa %s1281, 1

</llo_original>
